<compile_context>
chip_gen: v7x
topology: tpu7x:2x2x1
jax: 0.10.0
libtpu: 0.0.40
codegen_flags: <defaults>
</compile_context>

<pallas_src>
import functools

import jax
import jax.numpy as jnp
from jax import lax
from jax.experimental import pallas as pl
from jax.experimental.pallas import tpu as pltpu

SEQ_LEN = 5
VOCAB_SIZE = 6
S = SEQ_LEN + 2            # 7 positions (matches positional_encoding rows)
D = 64                     # num_hidden
H = 4                      # num_heads
OUT_DIM = 2 * SEQ_LEN + 1  # 11
OUT_PAD = 128              # lane-dense output width; host slices [:OUT_DIM]
NEG_INF = -1e30


# ---------------- in-kernel helpers ----------------------------------------

def _matT(a, b):
    # a: [M, K], b: [N, K]  ->  a @ b.T : [M, N]
    return lax.dot_general(a, b, (((1,), (1,)), ((), ())),
                           preferred_element_type=jnp.float32)


def _layernorm(x, gamma, beta, eps=1e-5):
    mu = jnp.mean(x, axis=-1, keepdims=True)
    var = jnp.mean((x - mu) ** 2, axis=-1, keepdims=True)
    return (x - mu) * lax.rsqrt(var + eps) * gamma + beta


def _block_ids(idx_f32):
    # floor((i + 0.5) / S) in f32 (exact for the tiny indices used here);
    # avoids vector integer division, which has no clean VPU lowering.
    return jnp.floor((idx_f32 + 0.5) * (1.0 / S))


# ---------------- the kernel ------------------------------------------------

def _net_kernel(onehot_ref, table_ref, mcat_ref, gcat_ref,
                wcc1_ref, wcc2_ref, wdec_ref, vec_ref, out_ref,
                *, b_blk, r):
    f32 = jnp.float32

    # Packed one-row vectors (biases / LayerNorm affines): one [8, 128] slab.
    vec = vec_ref[...]
    bo_e = vec[0:1, :D]
    g1, be1 = vec[1:2, :D], vec[2:3, :D]
    g2, be2 = vec[3:4, :D], vec[4:5, :D]
    bcc1 = vec[5:6, :]            # [1, 2D]
    bcc2 = vec[6:7, :D]
    b_dec = vec[7:8, :]           # [1, OUT_PAD]

    # (token | position) one-hot @ folded (embedding ∘ Net.c1 ∘ pos ∘ bias) table
    x = jnp.dot(onehot_ref[...], table_ref[...], preferred_element_type=f32)   # [R, D]

    # Block-diagonal additive mask, generated in-kernel.
    rb = _block_ids(lax.broadcasted_iota(jnp.int32, (r, r), 0).astype(f32))
    cb = _block_ids(lax.broadcasted_iota(jnp.int32, (r, r), 1).astype(f32))
    mask = jnp.where(rb == cb, 0.0, NEG_INF).astype(f32)

    # ---- EncodingLayer: MultiHeadAttention over the whole batch block ------
    # torch.softmax(dim=1) normalizes over the *query* axis; the block-diagonal
    # mask keeps the normalization exactly per batch element.  Per head h
    # (weights folded on host, 1/sqrt(D) folded into mcat):
    #   energy_h   = x (Wq_h^T Wk_h / sqrt(D)) x^T
    #   head_out_h = softmax_q(energy_h) @ (x (Wv_h^T Wo_h^T))
    xm_all = jnp.dot(x, mcat_ref[...], preferred_element_type=f32)   # [R, H*D]
    xg_all = jnp.dot(x, gcat_ref[...], preferred_element_type=f32)   # [R, H*D]
    att_out = jnp.zeros((r, D), dtype=f32)
    for h in range(H):
        energy = _matT(xm_all[:, h * D:(h + 1) * D], x) + mask       # [R, R]
        m = jnp.max(energy, axis=0, keepdims=True)
        p = jnp.exp(energy - m)
        att = p * pl.reciprocal(jnp.sum(p, axis=0, keepdims=True), approx=True)
        att_out = att_out + jnp.dot(att, xg_all[:, h * D:(h + 1) * D],
                                    preferred_element_type=f32)
    x = att_out + bo_e

    x = _layernorm(x, g1, be1)
    # Position-wise FFN: Conv1d(k=1) -> ReLU -> Conv1d(k=1) -> ReLU, residual.
    x1 = jnp.maximum(jnp.dot(x, wcc1_ref[...], preferred_element_type=f32) + bcc1, 0.0)
    x1 = jnp.maximum(jnp.dot(x1, wcc2_ref[...], preferred_element_type=f32) + bcc2, 0.0)
    x = _layernorm(x + x1, g2, be2)

    # ---- decoding MHA + fc1, fully folded -----------------------------------
    # Sq == 1 and torch.softmax(dim=1) is over that size-1 query axis, so every
    # attention weight is exactly 1.0: the decoder reduces to a per-batch sum
    # of value vectors.  Everything after that sum (Wv cat, Wo, fc1) is linear
    # and pre-folded into wdec/b_dec on the host (exact).
    bi = lax.broadcasted_iota(jnp.int32, (b_blk, r), 0).astype(f32)
    ki = _block_ids(lax.broadcasted_iota(jnp.int32, (b_blk, r), 1).astype(f32))
    rowsel = (bi == ki).astype(f32)                                   # [B_BLK, R]
    xs = jnp.dot(rowsel, x, preferred_element_type=f32)               # [B_BLK, D]
    out_ref[...] = jnp.dot(xs, wdec_ref[...], preferred_element_type=f32) + b_dec


# ---------------- host-side wrapper -----------------------------------------

def make_params(key):
    keys = iter(jax.random.split(key, 40))

    def nrm(shape, scale=0.1):
        return (scale * jax.random.normal(next(keys), shape)).astype(jnp.float32)

    return dict(
        emb=nrm((VOCAB_SIZE, D), 1.0),          # nn.Embedding weight
        pos=nrm((S, 1), 1.0),                   # positional_encoding
        wc1=nrm((D, D + 1)),                    # Net.c1 Conv1d weight (k=1 squeezed)
        bc1=nrm((1, D)),
        wq_e=nrm((H, D, D)), wk_e=nrm((H, D, D)), wv_e=nrm((H, D, D)),
        wo_e=nrm((D, H * D)), bo_e=nrm((1, D)),
        g1=jnp.ones((1, D), jnp.float32), be1=jnp.zeros((1, D), jnp.float32),
        wcc1=nrm((2 * D, D)), bcc1=nrm((1, 2 * D)),   # EncodingLayer.c1
        wcc2=nrm((D, 2 * D)), bcc2=nrm((1, D)),       # EncodingLayer.c2
        g2=jnp.ones((1, D), jnp.float32), be2=jnp.zeros((1, D), jnp.float32),
        # decoder Q/K weights and the learned query are module parameters but
        # are unused in the forward (softmax over a size-1 query axis == 1.0).
        wq_d=nrm((H, D, D)), wk_d=nrm((H, D, D)), wv_d=nrm((H, D, D)),
        wo_d=nrm((D, H * D)), bo_d=nrm((1, D)),
        q=nrm((1, D), 1.0),
        wfc=nrm((OUT_DIM, D)), bfc=nrm((1, OUT_DIM)),
    )


def _pick_b_blk(B):
    # Rows per block R = b_blk * S; target ~128 rows (v5e MXU) to ~256
    # (v6e/v7x).  Must be a multiple of 8 so R is sublane-aligned.  Sweep per
    # generation if tuning; block-diagonal score/exp waste grows with b_blk.
    if B >= 32:
        return 32      # R = 224
    if B >= 16:
        return 16      # R = 112
    return 8           # R = 56 (tiny batches)


def _hdot(a, b):
    # Host-side parameter folding in full f32 precision (exact algebra).
    return jnp.dot(a, b, precision=lax.Precision.HIGHEST)


def net_forward(tokens, params):
    B = tokens.shape[0]
    b_blk = _pick_b_blk(B)
    n_blocks = (B + b_blk - 1) // b_blk
    B_pad = n_blocks * b_blk
    r = b_blk * S

    # Combined (token | position) one-hot rows, flattened to [B_pad*S, V+S].
    tok_oh = jax.nn.one_hot(tokens, VOCAB_SIZE, dtype=jnp.float32)        # [B, S, V]
    if B_pad != B:
        tok_oh = jnp.pad(tok_oh, ((0, B_pad - B), (0, 0), (0, 0)))
    pos_oh = jnp.broadcast_to(jnp.eye(S, dtype=jnp.float32)[None], (B_pad, S, S))
    oh = jnp.concatenate([tok_oh, pos_oh], axis=-1).reshape(B_pad * S, VOCAB_SIZE + S)

    # ---------- parameter-only precomputation (host glue, exact) ----------
    wc1 = params['wc1']                                            # [D, D+1]
    table = jnp.concatenate(
        [_hdot(params['emb'], wc1[:, :D].T),                       # embedding ∘ c1
         _hdot(params['pos'], wc1[:, D:].T) + params['bc1']],      # pos column + bias
        axis=0)                                                    # [V+S, D]

    scale = 1.0 / (D ** 0.5)
    wo_e = params['wo_e']
    m_cat = jnp.concatenate(
        [_hdot(params['wq_e'][h].T, params['wk_e'][h]) * scale for h in range(H)],
        axis=1)                                                    # [D, H*D]
    g_cat = jnp.concatenate(
        [_hdot(params['wv_e'][h].T, wo_e[:, h * D:(h + 1) * D].T) for h in range(H)],
        axis=1)                                                    # [D, H*D]

    wcc1T = params['wcc1'].T                                       # [D, 2D]
    wcc2T = params['wcc2'].T                                       # [2D, D]

    # Fold the whole post-sum decoder (value cat -> output linear -> fc1).
    wv_dT = jnp.concatenate([params['wv_d'][h].T for h in range(H)], axis=1)  # [D, H*D]
    w_dec = _hdot(_hdot(wv_dT, params['wo_d'].T), params['wfc'].T)            # [D, OUT_DIM]
    b_dec = _hdot(params['bo_d'], params['wfc'].T) + params['bfc']            # [1, OUT_DIM]
    w_dec = jnp.pad(w_dec, ((0, 0), (0, OUT_PAD - OUT_DIM)))                  # lane-dense
    b_dec = jnp.pad(b_dec, ((0, 0), (0, OUT_PAD - OUT_DIM)))

    def row128(v):
        return jnp.pad(v, ((0, 0), (0, OUT_PAD - v.shape[1])))

    vecs = jnp.concatenate(
        [row128(params['bo_e']),
         row128(params['g1']), row128(params['be1']),
         row128(params['g2']), row128(params['be2']),
         row128(params['bcc1']), row128(params['bcc2']),
         b_dec], axis=0)                                           # [8, 128]

    args = [oh, table, m_cat, g_cat, wcc1T, wcc2T, w_dec, vecs]

    def full_spec(a):
        nd = a.ndim
        return pl.BlockSpec(a.shape, lambda i, _n=nd: (0,) * _n)

    in_specs = [pl.BlockSpec((r, VOCAB_SIZE + S), lambda i: (i, 0))]
    in_specs += [full_spec(a) for a in args[1:]]

    kernel = functools.partial(_net_kernel, b_blk=b_blk, r=r)

    out = pl.pallas_call(
        kernel,
        out_shape=jax.ShapeDtypeStruct((B_pad, OUT_PAD), jnp.float32),
        grid_spec=pltpu.PrefetchScalarGridSpec(
            num_scalar_prefetch=0,
            grid=(n_blocks,),
            in_specs=in_specs,
            out_specs=pl.BlockSpec((b_blk, OUT_PAD), lambda i: (i, 0)),
        ),
        compiler_params=pltpu.CompilerParams(
            dimension_semantics=("parallel",)),   # batch blocks are independent
    )(*args)
    return out[:B, :OUT_DIM]


if __name__ == "__main__":
    key = jax.random.PRNGKey(0)
    pkey, dkey = jax.random.split(key)
    params = make_params(pkey)

    B = 2
    tokens = jax.random.randint(dkey, (B, S), 0, VOCAB_SIZE, dtype=jnp.int32)  # [2, 7]

    fwd = jax.jit(net_forward)
    out = jax.block_until_ready(fwd(tokens, params))

    assert out.shape == (B, OUT_DIM), out.shape
    assert bool(jnp.all(jnp.isfinite(out)))
    print("KERNEL_OK")
</pallas_src>

<mosaic_0001>
module attributes {stable_mosaic.version = 11 : i64} {
  func.func @_net_kernel(%arg0: i32, %arg1: memref<56x13xf32, #tpu.memory_space<vmem>>, %arg2: memref<13x64xf32, #tpu.memory_space<vmem>>, %arg3: memref<64x256xf32, #tpu.memory_space<vmem>>, %arg4: memref<64x256xf32, #tpu.memory_space<vmem>>, %arg5: memref<64x128xf32, #tpu.memory_space<vmem>>, %arg6: memref<128x64xf32, #tpu.memory_space<vmem>>, %arg7: memref<64x128xf32, #tpu.memory_space<vmem>>, %arg8: memref<8x128xf32, #tpu.memory_space<vmem>>, %arg9: memref<8x128xf32, #tpu.memory_space<vmem>>) attributes {dimension_semantics = [#tpu.dimension_semantics<parallel>], iteration_bounds = array<i64: 1>, scalar_prefetch = 0 : i64, scratch_operands = 0 : i64, tpu.core_type = #tpu.core_type<tc>, window_params = [{transform_indices = @transform_0, window_bounds = array<i64: 56, 13>}, {pipeline_mode = #tpu.pipeline_mode<synchronous>, transform_indices = @transform_1, window_bounds = array<i64: 13, 64>}, {pipeline_mode = #tpu.pipeline_mode<synchronous>, transform_indices = @transform_2, window_bounds = array<i64: 64, 256>}, {pipeline_mode = #tpu.pipeline_mode<synchronous>, transform_indices = @transform_3, window_bounds = array<i64: 64, 256>}, {pipeline_mode = #tpu.pipeline_mode<synchronous>, transform_indices = @transform_4, window_bounds = array<i64: 64, 128>}, {pipeline_mode = #tpu.pipeline_mode<synchronous>, transform_indices = @transform_5, window_bounds = array<i64: 128, 64>}, {pipeline_mode = #tpu.pipeline_mode<synchronous>, transform_indices = @transform_6, window_bounds = array<i64: 64, 128>}, {pipeline_mode = #tpu.pipeline_mode<synchronous>, transform_indices = @transform_7, window_bounds = array<i64: 8, 128>}, {transform_indices = @transform_8, window_bounds = array<i64: 8, 128>}]} {
    %c0 = arith.constant 0 : index
    %c0_0 = arith.constant 0 : index
    %0 = vector.load %arg8[%c0, %c0_0] : memref<8x128xf32, #tpu.memory_space<vmem>>, vector<8x128xf32>
    %1 = vector.extract_strided_slice %0 {offsets = [0, 0], sizes = [1, 64], strides = [1, 1]} : vector<8x128xf32> to vector<1x64xf32>
    %2 = vector.extract_strided_slice %0 {offsets = [1, 0], sizes = [1, 64], strides = [1, 1]} : vector<8x128xf32> to vector<1x64xf32>
    %3 = vector.extract_strided_slice %0 {offsets = [2, 0], sizes = [1, 64], strides = [1, 1]} : vector<8x128xf32> to vector<1x64xf32>
    %4 = vector.extract_strided_slice %0 {offsets = [3, 0], sizes = [1, 64], strides = [1, 1]} : vector<8x128xf32> to vector<1x64xf32>
    %5 = vector.extract_strided_slice %0 {offsets = [4, 0], sizes = [1, 64], strides = [1, 1]} : vector<8x128xf32> to vector<1x64xf32>
    %6 = vector.extract_strided_slice %0 {offsets = [5, 0], sizes = [1, 128], strides = [1, 1]} : vector<8x128xf32> to vector<1x128xf32>
    %7 = vector.extract_strided_slice %0 {offsets = [6, 0], sizes = [1, 64], strides = [1, 1]} : vector<8x128xf32> to vector<1x64xf32>
    %8 = vector.extract_strided_slice %0 {offsets = [7, 0], sizes = [1, 128], strides = [1, 1]} : vector<8x128xf32> to vector<1x128xf32>
    %c0_1 = arith.constant 0 : index
    %c0_2 = arith.constant 0 : index
    %9 = vector.load %arg1[%c0_1, %c0_2] : memref<56x13xf32, #tpu.memory_space<vmem>>, vector<56x13xf32>
    %c0_3 = arith.constant 0 : index
    %c0_4 = arith.constant 0 : index
    %10 = vector.load %arg2[%c0_3, %c0_4] : memref<13x64xf32, #tpu.memory_space<vmem>>, vector<13x64xf32>
    %cst = arith.constant dense<0.000000e+00> : vector<56x64xf32>
    %11 = tpu.matmul %9, %10, %cst {dimension_numbers = #tpu.dot_dimension_numbers<[1], [0], [0], [1], [0, 0, 1, 1], [], []>} : vector<56x13xf32>, vector<13x64xf32>, vector<56x64xf32> -> vector<56x64xf32>
    %12 = tpu.iota {dimensions = array<i32: 0>} : vector<56x56xi32>
    %13 = arith.sitofp %12 : vector<56x56xi32> to vector<56x56xf32>
    %cst_5 = arith.constant 5.000000e-01 : f32
    %14 = vector.broadcast %cst_5 : f32 to vector<56x56xf32>
    %15 = arith.addf %13, %14 : vector<56x56xf32>
    %cst_6 = arith.constant 0.142857149 : f32
    %16 = vector.broadcast %cst_6 : f32 to vector<56x56xf32>
    %17 = arith.mulf %15, %16 : vector<56x56xf32>
    %18 = math.floor %17 : vector<56x56xf32>
    %19 = tpu.iota {dimensions = array<i32: 1>} : vector<56x56xi32>
    %20 = arith.sitofp %19 : vector<56x56xi32> to vector<56x56xf32>
    %cst_7 = arith.constant 5.000000e-01 : f32
    %21 = vector.broadcast %cst_7 : f32 to vector<56x56xf32>
    %22 = arith.addf %20, %21 : vector<56x56xf32>
    %cst_8 = arith.constant 0.142857149 : f32
    %23 = vector.broadcast %cst_8 : f32 to vector<56x56xf32>
    %24 = arith.mulf %22, %23 : vector<56x56xf32>
    %25 = math.floor %24 : vector<56x56xf32>
    %26 = arith.cmpf oeq, %18, %25 : vector<56x56xf32>
    %cst_9 = arith.constant 0.000000e+00 : f32
    %cst_10 = arith.constant -1.000000e+30 : f32
    %27 = vector.broadcast %cst_9 : f32 to vector<56x56xf32>
    %28 = vector.broadcast %cst_10 : f32 to vector<56x56xf32>
    %29 = arith.select %26, %27, %28 : vector<56x56xi1>, vector<56x56xf32>
    %c0_11 = arith.constant 0 : index
    %c0_12 = arith.constant 0 : index
    %30 = vector.load %arg3[%c0_11, %c0_12] : memref<64x256xf32, #tpu.memory_space<vmem>>, vector<64x256xf32>
    %cst_13 = arith.constant dense<0.000000e+00> : vector<56x256xf32>
    %31 = tpu.matmul %11, %30, %cst_13 {dimension_numbers = #tpu.dot_dimension_numbers<[1], [0], [0], [1], [0, 0, 1, 1], [], []>} : vector<56x64xf32>, vector<64x256xf32>, vector<56x256xf32> -> vector<56x256xf32>
    %c0_14 = arith.constant 0 : index
    %c0_15 = arith.constant 0 : index
    %32 = vector.load %arg4[%c0_14, %c0_15] : memref<64x256xf32, #tpu.memory_space<vmem>>, vector<64x256xf32>
    %cst_16 = arith.constant dense<0.000000e+00> : vector<56x256xf32>
    %33 = tpu.matmul %11, %32, %cst_16 {dimension_numbers = #tpu.dot_dimension_numbers<[1], [0], [0], [1], [0, 0, 1, 1], [], []>} : vector<56x64xf32>, vector<64x256xf32>, vector<56x256xf32> -> vector<56x256xf32>
    %cst_17 = arith.constant 0.000000e+00 : f32
    %34 = vector.broadcast %cst_17 : f32 to vector<56x64xf32>
    %35 = vector.extract_strided_slice %31 {offsets = [0, 0], sizes = [56, 64], strides = [1, 1]} : vector<56x256xf32> to vector<56x64xf32>
    %cst_18 = arith.constant dense<0.000000e+00> : vector<56x56xf32>
    %36 = tpu.matmul %35, %11, %cst_18 {dimension_numbers = #tpu.dot_dimension_numbers<[1], [1], [0], [0], [0, 0, 1, 0], [], []>} : vector<56x64xf32>, vector<56x64xf32>, vector<56x56xf32> -> vector<56x56xf32>
    %37 = arith.addf %36, %29 : vector<56x56xf32>
    %cst_19 = arith.constant dense<0xFF800000> : vector<56xf32>
    %38 = vector.multi_reduction <maximumf>, %37, %cst_19 [0] : vector<56x56xf32> to vector<56xf32>
    %39 = vector.shape_cast %38 : vector<56xf32> to vector<1x56xf32>
    %40 = vector.broadcast %39 : vector<1x56xf32> to vector<56x56xf32>
    %41 = arith.subf %37, %40 : vector<56x56xf32>
    %42 = math.exp %41 : vector<56x56xf32>
    %cst_20 = arith.constant dense<0.000000e+00> : vector<56xf32>
    %43 = vector.multi_reduction <add>, %42, %cst_20 [0] : vector<56x56xf32> to vector<56xf32>
    %44 = vector.shape_cast %43 : vector<56xf32> to vector<1x56xf32>
    %45 = tpu.reciprocal %44 {approx = true} : vector<1x56xf32> -> vector<1x56xf32>
    %46 = vector.broadcast %45 : vector<1x56xf32> to vector<56x56xf32>
    %47 = arith.mulf %42, %46 : vector<56x56xf32>
    %48 = vector.extract_strided_slice %33 {offsets = [0, 0], sizes = [56, 64], strides = [1, 1]} : vector<56x256xf32> to vector<56x64xf32>
    %cst_21 = arith.constant dense<0.000000e+00> : vector<56x64xf32>
    %49 = tpu.matmul %47, %48, %cst_21 {dimension_numbers = #tpu.dot_dimension_numbers<[1], [0], [0], [1], [0, 0, 1, 1], [], []>} : vector<56x56xf32>, vector<56x64xf32>, vector<56x64xf32> -> vector<56x64xf32>
    %50 = arith.addf %34, %49 : vector<56x64xf32>
    %51 = vector.extract_strided_slice %31 {offsets = [0, 64], sizes = [56, 64], strides = [1, 1]} : vector<56x256xf32> to vector<56x64xf32>
    %cst_22 = arith.constant dense<0.000000e+00> : vector<56x56xf32>
    %52 = tpu.matmul %51, %11, %cst_22 {dimension_numbers = #tpu.dot_dimension_numbers<[1], [1], [0], [0], [0, 0, 1, 0], [], []>} : vector<56x64xf32>, vector<56x64xf32>, vector<56x56xf32> -> vector<56x56xf32>
    %53 = arith.addf %52, %29 : vector<56x56xf32>
    %cst_23 = arith.constant dense<0xFF800000> : vector<56xf32>
    %54 = vector.multi_reduction <maximumf>, %53, %cst_23 [0] : vector<56x56xf32> to vector<56xf32>
    %55 = vector.shape_cast %54 : vector<56xf32> to vector<1x56xf32>
    %56 = vector.broadcast %55 : vector<1x56xf32> to vector<56x56xf32>
    %57 = arith.subf %53, %56 : vector<56x56xf32>
    %58 = math.exp %57 : vector<56x56xf32>
    %cst_24 = arith.constant dense<0.000000e+00> : vector<56xf32>
    %59 = vector.multi_reduction <add>, %58, %cst_24 [0] : vector<56x56xf32> to vector<56xf32>
    %60 = vector.shape_cast %59 : vector<56xf32> to vector<1x56xf32>
    %61 = tpu.reciprocal %60 {approx = true} : vector<1x56xf32> -> vector<1x56xf32>
    %62 = vector.broadcast %61 : vector<1x56xf32> to vector<56x56xf32>
    %63 = arith.mulf %58, %62 : vector<56x56xf32>
    %64 = vector.extract_strided_slice %33 {offsets = [0, 64], sizes = [56, 64], strides = [1, 1]} : vector<56x256xf32> to vector<56x64xf32>
    %cst_25 = arith.constant dense<0.000000e+00> : vector<56x64xf32>
    %65 = tpu.matmul %63, %64, %cst_25 {dimension_numbers = #tpu.dot_dimension_numbers<[1], [0], [0], [1], [0, 0, 1, 1], [], []>} : vector<56x56xf32>, vector<56x64xf32>, vector<56x64xf32> -> vector<56x64xf32>
    %66 = arith.addf %50, %65 : vector<56x64xf32>
    %67 = vector.extract_strided_slice %31 {offsets = [0, 128], sizes = [56, 64], strides = [1, 1]} : vector<56x256xf32> to vector<56x64xf32>
    %cst_26 = arith.constant dense<0.000000e+00> : vector<56x56xf32>
    %68 = tpu.matmul %67, %11, %cst_26 {dimension_numbers = #tpu.dot_dimension_numbers<[1], [1], [0], [0], [0, 0, 1, 0], [], []>} : vector<56x64xf32>, vector<56x64xf32>, vector<56x56xf32> -> vector<56x56xf32>
    %69 = arith.addf %68, %29 : vector<56x56xf32>
    %cst_27 = arith.constant dense<0xFF800000> : vector<56xf32>
    %70 = vector.multi_reduction <maximumf>, %69, %cst_27 [0] : vector<56x56xf32> to vector<56xf32>
    %71 = vector.shape_cast %70 : vector<56xf32> to vector<1x56xf32>
    %72 = vector.broadcast %71 : vector<1x56xf32> to vector<56x56xf32>
    %73 = arith.subf %69, %72 : vector<56x56xf32>
    %74 = math.exp %73 : vector<56x56xf32>
    %cst_28 = arith.constant dense<0.000000e+00> : vector<56xf32>
    %75 = vector.multi_reduction <add>, %74, %cst_28 [0] : vector<56x56xf32> to vector<56xf32>
    %76 = vector.shape_cast %75 : vector<56xf32> to vector<1x56xf32>
    %77 = tpu.reciprocal %76 {approx = true} : vector<1x56xf32> -> vector<1x56xf32>
    %78 = vector.broadcast %77 : vector<1x56xf32> to vector<56x56xf32>
    %79 = arith.mulf %74, %78 : vector<56x56xf32>
    %80 = vector.extract_strided_slice %33 {offsets = [0, 128], sizes = [56, 64], strides = [1, 1]} : vector<56x256xf32> to vector<56x64xf32>
    %cst_29 = arith.constant dense<0.000000e+00> : vector<56x64xf32>
    %81 = tpu.matmul %79, %80, %cst_29 {dimension_numbers = #tpu.dot_dimension_numbers<[1], [0], [0], [1], [0, 0, 1, 1], [], []>} : vector<56x56xf32>, vector<56x64xf32>, vector<56x64xf32> -> vector<56x64xf32>
    %82 = arith.addf %66, %81 : vector<56x64xf32>
    %83 = vector.extract_strided_slice %31 {offsets = [0, 192], sizes = [56, 64], strides = [1, 1]} : vector<56x256xf32> to vector<56x64xf32>
    %cst_30 = arith.constant dense<0.000000e+00> : vector<56x56xf32>
    %84 = tpu.matmul %83, %11, %cst_30 {dimension_numbers = #tpu.dot_dimension_numbers<[1], [1], [0], [0], [0, 0, 1, 0], [], []>} : vector<56x64xf32>, vector<56x64xf32>, vector<56x56xf32> -> vector<56x56xf32>
    %85 = arith.addf %84, %29 : vector<56x56xf32>
    %cst_31 = arith.constant dense<0xFF800000> : vector<56xf32>
    %86 = vector.multi_reduction <maximumf>, %85, %cst_31 [0] : vector<56x56xf32> to vector<56xf32>
    %87 = vector.shape_cast %86 : vector<56xf32> to vector<1x56xf32>
    %88 = vector.broadcast %87 : vector<1x56xf32> to vector<56x56xf32>
    %89 = arith.subf %85, %88 : vector<56x56xf32>
    %90 = math.exp %89 : vector<56x56xf32>
    %cst_32 = arith.constant dense<0.000000e+00> : vector<56xf32>
    %91 = vector.multi_reduction <add>, %90, %cst_32 [0] : vector<56x56xf32> to vector<56xf32>
    %92 = vector.shape_cast %91 : vector<56xf32> to vector<1x56xf32>
    %93 = tpu.reciprocal %92 {approx = true} : vector<1x56xf32> -> vector<1x56xf32>
    %94 = vector.broadcast %93 : vector<1x56xf32> to vector<56x56xf32>
    %95 = arith.mulf %90, %94 : vector<56x56xf32>
    %96 = vector.extract_strided_slice %33 {offsets = [0, 192], sizes = [56, 64], strides = [1, 1]} : vector<56x256xf32> to vector<56x64xf32>
    %cst_33 = arith.constant dense<0.000000e+00> : vector<56x64xf32>
    %97 = tpu.matmul %95, %96, %cst_33 {dimension_numbers = #tpu.dot_dimension_numbers<[1], [0], [0], [1], [0, 0, 1, 1], [], []>} : vector<56x56xf32>, vector<56x64xf32>, vector<56x64xf32> -> vector<56x64xf32>
    %98 = arith.addf %82, %97 : vector<56x64xf32>
    %99 = vector.broadcast %1 : vector<1x64xf32> to vector<56x64xf32>
    %100 = arith.addf %98, %99 : vector<56x64xf32>
    %cst_34 = arith.constant dense<0.000000e+00> : vector<56xf32>
    %101 = vector.multi_reduction <add>, %100, %cst_34 [1] : vector<56x64xf32> to vector<56xf32>
    %102 = vector.shape_cast %101 : vector<56xf32> to vector<56x1xf32>
    %cst_35 = arith.constant 6.400000e+01 : f32
    %103 = vector.broadcast %cst_35 : f32 to vector<56x1xf32>
    %104 = arith.divf %102, %103 : vector<56x1xf32>
    %105 = vector.broadcast %104 : vector<56x1xf32> to vector<56x64xf32>
    %106 = arith.subf %100, %105 : vector<56x64xf32>
    %107 = arith.mulf %106, %106 : vector<56x64xf32>
    %cst_36 = arith.constant dense<0.000000e+00> : vector<56xf32>
    %108 = vector.multi_reduction <add>, %107, %cst_36 [1] : vector<56x64xf32> to vector<56xf32>
    %109 = vector.shape_cast %108 : vector<56xf32> to vector<56x1xf32>
    %cst_37 = arith.constant 6.400000e+01 : f32
    %110 = vector.broadcast %cst_37 : f32 to vector<56x1xf32>
    %111 = arith.divf %109, %110 : vector<56x1xf32>
    %112 = vector.broadcast %104 : vector<56x1xf32> to vector<56x64xf32>
    %113 = arith.subf %100, %112 : vector<56x64xf32>
    %cst_38 = arith.constant 9.99999974E-6 : f32
    %114 = vector.broadcast %cst_38 : f32 to vector<56x1xf32>
    %115 = arith.addf %111, %114 : vector<56x1xf32>
    %116 = math.rsqrt %115 : vector<56x1xf32>
    %117 = vector.broadcast %116 : vector<56x1xf32> to vector<56x64xf32>
    %118 = arith.mulf %113, %117 : vector<56x64xf32>
    %119 = vector.broadcast %2 : vector<1x64xf32> to vector<56x64xf32>
    %120 = arith.mulf %118, %119 : vector<56x64xf32>
    %121 = vector.broadcast %3 : vector<1x64xf32> to vector<56x64xf32>
    %122 = arith.addf %120, %121 : vector<56x64xf32>
    %c0_39 = arith.constant 0 : index
    %c0_40 = arith.constant 0 : index
    %123 = vector.load %arg5[%c0_39, %c0_40] : memref<64x128xf32, #tpu.memory_space<vmem>>, vector<64x128xf32>
    %cst_41 = arith.constant dense<0.000000e+00> : vector<56x128xf32>
    %124 = tpu.matmul %122, %123, %cst_41 {dimension_numbers = #tpu.dot_dimension_numbers<[1], [0], [0], [1], [0, 0, 1, 1], [], []>} : vector<56x64xf32>, vector<64x128xf32>, vector<56x128xf32> -> vector<56x128xf32>
    %125 = vector.broadcast %6 : vector<1x128xf32> to vector<56x128xf32>
    %126 = arith.addf %124, %125 : vector<56x128xf32>
    %cst_42 = arith.constant 0.000000e+00 : f32
    %127 = vector.broadcast %cst_42 : f32 to vector<56x128xf32>
    %128 = arith.maximumf %126, %127 : vector<56x128xf32>
    %c0_43 = arith.constant 0 : index
    %c0_44 = arith.constant 0 : index
    %129 = vector.load %arg6[%c0_43, %c0_44] : memref<128x64xf32, #tpu.memory_space<vmem>>, vector<128x64xf32>
    %cst_45 = arith.constant dense<0.000000e+00> : vector<56x64xf32>
    %130 = tpu.matmul %128, %129, %cst_45 {dimension_numbers = #tpu.dot_dimension_numbers<[1], [0], [0], [1], [0, 0, 1, 1], [], []>} : vector<56x128xf32>, vector<128x64xf32>, vector<56x64xf32> -> vector<56x64xf32>
    %131 = vector.broadcast %7 : vector<1x64xf32> to vector<56x64xf32>
    %132 = arith.addf %130, %131 : vector<56x64xf32>
    %cst_46 = arith.constant 0.000000e+00 : f32
    %133 = vector.broadcast %cst_46 : f32 to vector<56x64xf32>
    %134 = arith.maximumf %132, %133 : vector<56x64xf32>
    %135 = arith.addf %122, %134 : vector<56x64xf32>
    %cst_47 = arith.constant dense<0.000000e+00> : vector<56xf32>
    %136 = vector.multi_reduction <add>, %135, %cst_47 [1] : vector<56x64xf32> to vector<56xf32>
    %137 = vector.shape_cast %136 : vector<56xf32> to vector<56x1xf32>
    %cst_48 = arith.constant 6.400000e+01 : f32
    %138 = vector.broadcast %cst_48 : f32 to vector<56x1xf32>
    %139 = arith.divf %137, %138 : vector<56x1xf32>
    %140 = vector.broadcast %139 : vector<56x1xf32> to vector<56x64xf32>
    %141 = arith.subf %135, %140 : vector<56x64xf32>
    %142 = arith.mulf %141, %141 : vector<56x64xf32>
    %cst_49 = arith.constant dense<0.000000e+00> : vector<56xf32>
    %143 = vector.multi_reduction <add>, %142, %cst_49 [1] : vector<56x64xf32> to vector<56xf32>
    %144 = vector.shape_cast %143 : vector<56xf32> to vector<56x1xf32>
    %cst_50 = arith.constant 6.400000e+01 : f32
    %145 = vector.broadcast %cst_50 : f32 to vector<56x1xf32>
    %146 = arith.divf %144, %145 : vector<56x1xf32>
    %147 = vector.broadcast %139 : vector<56x1xf32> to vector<56x64xf32>
    %148 = arith.subf %135, %147 : vector<56x64xf32>
    %cst_51 = arith.constant 9.99999974E-6 : f32
    %149 = vector.broadcast %cst_51 : f32 to vector<56x1xf32>
    %150 = arith.addf %146, %149 : vector<56x1xf32>
    %151 = math.rsqrt %150 : vector<56x1xf32>
    %152 = vector.broadcast %151 : vector<56x1xf32> to vector<56x64xf32>
    %153 = arith.mulf %148, %152 : vector<56x64xf32>
    %154 = vector.broadcast %4 : vector<1x64xf32> to vector<56x64xf32>
    %155 = arith.mulf %153, %154 : vector<56x64xf32>
    %156 = vector.broadcast %5 : vector<1x64xf32> to vector<56x64xf32>
    %157 = arith.addf %155, %156 : vector<56x64xf32>
    %158 = tpu.iota {dimensions = array<i32: 0>} : vector<8x56xi32>
    %159 = arith.sitofp %158 : vector<8x56xi32> to vector<8x56xf32>
    %160 = tpu.iota {dimensions = array<i32: 1>} : vector<8x56xi32>
    %161 = arith.sitofp %160 : vector<8x56xi32> to vector<8x56xf32>
    %cst_52 = arith.constant 5.000000e-01 : f32
    %162 = vector.broadcast %cst_52 : f32 to vector<8x56xf32>
    %163 = arith.addf %161, %162 : vector<8x56xf32>
    %cst_53 = arith.constant 0.142857149 : f32
    %164 = vector.broadcast %cst_53 : f32 to vector<8x56xf32>
    %165 = arith.mulf %163, %164 : vector<8x56xf32>
    %166 = math.floor %165 : vector<8x56xf32>
    %167 = arith.cmpf oeq, %159, %166 : vector<8x56xf32>
    %168 = arith.extui %167 : vector<8x56xi1> to vector<8x56xi32>
    %169 = arith.sitofp %168 : vector<8x56xi32> to vector<8x56xf32>
    %cst_54 = arith.constant dense<0.000000e+00> : vector<8x64xf32>
    %170 = tpu.matmul %169, %157, %cst_54 {dimension_numbers = #tpu.dot_dimension_numbers<[1], [0], [0], [1], [0, 0, 1, 1], [], []>} : vector<8x56xf32>, vector<56x64xf32>, vector<8x64xf32> -> vector<8x64xf32>
    %c0_55 = arith.constant 0 : index
    %c0_56 = arith.constant 0 : index
    %171 = vector.load %arg7[%c0_55, %c0_56] : memref<64x128xf32, #tpu.memory_space<vmem>>, vector<64x128xf32>
    %cst_57 = arith.constant dense<0.000000e+00> : vector<8x128xf32>
    %172 = tpu.matmul %170, %171, %cst_57 {dimension_numbers = #tpu.dot_dimension_numbers<[1], [0], [0], [1], [0, 0, 1, 1], [], []>} : vector<8x64xf32>, vector<64x128xf32>, vector<8x128xf32> -> vector<8x128xf32>
    %173 = vector.broadcast %8 : vector<1x128xf32> to vector<8x128xf32>
    %174 = arith.addf %172, %173 : vector<8x128xf32>
    %c0_58 = arith.constant 0 : index
    %c0_59 = arith.constant 0 : index
    %175 = vector.load %arg9[%c0_58, %c0_59] : memref<8x128xf32, #tpu.memory_space<vmem>>, vector<8x128xf32>
    tpu.vector_store %arg9[%c0_58, %c0_59], %174 {strides = array<i32>} : memref<8x128xf32, #tpu.memory_space<vmem>>, vector<8x128xf32>,
    return
  }
  func.func @transform_0(%arg0: i32) -> (i32, i32) {
    %c0_i32 = arith.constant 0 : i32
    %c0_i32_0 = arith.constant 0 : i32
    return %arg0, %c0_i32 : i32, i32
  }
  func.func @transform_1(%arg0: i32) -> (i32, i32) {
    %c0_i32 = arith.constant 0 : i32
    %c0_i32_0 = arith.constant 0 : i32
    %c0_i32_1 = arith.constant 0 : i32
    return %c0_i32, %c0_i32_0 : i32, i32
  }
  func.func @transform_2(%arg0: i32) -> (i32, i32) {
    %c0_i32 = arith.constant 0 : i32
    %c0_i32_0 = arith.constant 0 : i32
    %c0_i32_1 = arith.constant 0 : i32
    return %c0_i32, %c0_i32_0 : i32, i32
  }
  func.func @transform_3(%arg0: i32) -> (i32, i32) {
    %c0_i32 = arith.constant 0 : i32
    %c0_i32_0 = arith.constant 0 : i32
    %c0_i32_1 = arith.constant 0 : i32
    return %c0_i32, %c0_i32_0 : i32, i32
  }
  func.func @transform_4(%arg0: i32) -> (i32, i32) {
    %c0_i32 = arith.constant 0 : i32
    %c0_i32_0 = arith.constant 0 : i32
    %c0_i32_1 = arith.constant 0 : i32
    return %c0_i32, %c0_i32_0 : i32, i32
  }
  func.func @transform_5(%arg0: i32) -> (i32, i32) {
    %c0_i32 = arith.constant 0 : i32
    %c0_i32_0 = arith.constant 0 : i32
    %c0_i32_1 = arith.constant 0 : i32
    return %c0_i32, %c0_i32_0 : i32, i32
  }
  func.func @transform_6(%arg0: i32) -> (i32, i32) {
    %c0_i32 = arith.constant 0 : i32
    %c0_i32_0 = arith.constant 0 : i32
    %c0_i32_1 = arith.constant 0 : i32
    return %c0_i32, %c0_i32_0 : i32, i32
  }
  func.func @transform_7(%arg0: i32) -> (i32, i32) {
    %c0_i32 = arith.constant 0 : i32
    %c0_i32_0 = arith.constant 0 : i32
    %c0_i32_1 = arith.constant 0 : i32
    return %c0_i32, %c0_i32_0 : i32, i32
  }
  func.func @transform_8(%arg0: i32) -> (i32, i32) {
    %c0_i32 = arith.constant 0 : i32
    %c0_i32_0 = arith.constant 0 : i32
    return %arg0, %c0_i32 : i32, i32
  }
}

</mosaic_0001>

<llo_original>
// kernel: net_forward.1
$region0: #{net_forward.1}
  #allocation0 [shape = 'u32[]', space=smem, size = 0x4, offset = 0x4, fixed_abs, tag = 'smem constant byte address 0x4 - core index']
  #allocation1 [shape = 'u32[144,128]{1,0:T(1,128)}', space=vmem, size = 0x12000, scoped, tag = 'internal scratch']
  %s0 = inlined_call_operand.vmem [shape: f32[56,13], index: 0, kind: input, shape index: {}]
  %s1 = inlined_call_operand.vmem [shape: f32[13,64], index: 1, kind: input, shape index: {}]
  %s2 = inlined_call_operand.vmem [shape: f32[64,256], index: 2, kind: input, shape index: {}]
  %s3 = inlined_call_operand.vmem [shape: f32[64,256], index: 3, kind: input, shape index: {}]
  %s4 = inlined_call_operand.vmem [shape: f32[64,128], index: 4, kind: input, shape index: {}]
  %s5 = inlined_call_operand.vmem [shape: f32[128,64], index: 5, kind: input, shape index: {}]
  %s6 = inlined_call_operand.vmem [shape: f32[64,128], index: 6, kind: input, shape index: {}]
  %s7 = inlined_call_operand.vmem [shape: f32[8,128], index: 7, kind: input, shape index: {}]
  %s8 = inlined_call_operand.vmem [shape: f32[8,128], index: 8, kind: output, shape index: {}]
  %s9 = sld [smem:[#allocation0]]
  $region42: #{net_forward.1} parent=0
    _
  %s11 = ssub.s32 1, %s9
  %s12 = scalar_select 0, %s11, %s9
  // Predicated region
  $region2: #{net_forward.1} parent=0 // pred_check
    _
  $region3: #{net_forward.1} parent=0 // pred_check_branch
    %14 = sbr.rel (0) target = $region5
  $region4: #{net_forward.1} parent=0 // pred_region
    _
  $region5: #{net_forward.1} parent=0 // pred_fallthru
    _
  // Predicated region
  $region6: #{net_forward.1} parent=0 // pred_check
    _
  $region7: #{net_forward.1} parent=0 // pred_check_branch
    %16 = sbr.rel (0) target = $region9
  $region8: #{net_forward.1} parent=0 // pred_region
    _
  $region9: #{net_forward.1} parent=0 // pred_fallthru
    _
  // Predicated region
  $region10: #{net_forward.1} parent=0 // pred_check
    _
  $region11: #{net_forward.1} parent=0 // pred_check_branch
    %18 = sbr.rel (0) target = $region13
  $region12: #{net_forward.1} parent=0 // pred_region
    _
  $region13: #{net_forward.1} parent=0 // pred_fallthru
    _
  // Predicated region
  $region14: #{net_forward.1} parent=0 // pred_check
    _
  $region15: #{net_forward.1} parent=0 // pred_check_branch
    %20 = sbr.rel (0) target = $region17
  $region16: #{net_forward.1} parent=0 // pred_region
    _
  $region17: #{net_forward.1} parent=0 // pred_fallthru
    _
  // Predicated region
  $region18: #{net_forward.1} parent=0 // pred_check
    _
  $region19: #{net_forward.1} parent=0 // pred_check_branch
    %22 = sbr.rel (0) target = $region21
  $region20: #{net_forward.1} parent=0 // pred_region
    _
  $region21: #{net_forward.1} parent=0 // pred_fallthru
    _
  // Predicated region
  $region22: #{net_forward.1} parent=0 // pred_check
    _
  $region23: #{net_forward.1} parent=0 // pred_check_branch
    %24 = sbr.rel (0) target = $region25
  $region24: #{net_forward.1} parent=0 // pred_region
    _
  $region25: #{net_forward.1} parent=0 // pred_fallthru
    _
  // Predicated region
  $region26: #{net_forward.1} parent=0 // pred_check
    _
  $region27: #{net_forward.1} parent=0 // pred_check_branch
    %26 = sbr.rel (0) target = $region29
  $region28: #{net_forward.1} parent=0 // pred_region
    _
  $region29: #{net_forward.1} parent=0 // pred_fallthru
    _
  // Predicated region
  $region30: #{net_forward.1} parent=0 // pred_check
    _
  $region31: #{net_forward.1} parent=0 // pred_check_branch
    %28 = sbr.rel (0) target = $region33
  $region32: #{net_forward.1} parent=0 // pred_region
    _
  $region33: #{net_forward.1} parent=0 // pred_fallthru
    _
  %v29 = vld [vmem:[%s7] sm:$0xff]
  %v30 = vld [vmem:[%s0] sm:$0xff]
  %v31 = vld [vmem:[%s0 + $0x8] sm:$0xff]
  %v32 = vld [vmem:[%s0 + $0x10] sm:$0xff]
  %v33 = vld [vmem:[%s0 + $0x18] sm:$0xff]
  %v34 = vld [vmem:[%s0 + $0x20] sm:$0xff]
  %v35 = vld [vmem:[%s0 + $0x28] sm:$0xff]
  %v36 = vld [vmem:[%s0 + $0x30] sm:$0xff]
  %v37 = vld [vmem:[%s1] sm:$0xff]
  %v38 = vld [vmem:[%s1 + $0x8] sm:$0x1f]
  %vm39 = vcmask 105472
  %v41 = vsel %vm39, %v30, 0
  %v44 = vsel %vm39, %v31, 0
  %v47 = vsel %vm39, %v32, 0
  %v50 = vsel %vm39, %v33, 0
  %v53 = vsel %vm39, %v34, 0
  %v56 = vsel %vm39, %v35, 0
  %v59 = vsel %vm39, %v36, 0
  %vm61 = vcmask 1044480
  %v63 = vsel %vm61, %v38, 0
  %65 = vmatprep.subr.mxu0 0.0
  %66 = vmatpush1.msra.mxu0 %v37
  %67 = vmatprep.subr.mxu0 0.0
  %68 = vmatpush1.msra.mxu0 %v63
  %69 = vmatprep.subr.mxu0 0.0
  %70 = vmatpush1.msra.mxu0 0.0
  %71 = vmatprep.subr.mxu0 0.0
  %72 = vmatpush1.msra.mxu0 0.0
  %73 = vmatprep.subr.mxu0 0.0
  %74 = vmatpush1.msra.mxu0 0.0
  %75 = vmatprep.subr.mxu0 0.0
  %76 = vmatpush1.msra.mxu0 0.0
  %77 = vmatprep.subr.mxu0 0.0
  %78 = vmatpush1.msra.mxu0 0.0
  %79 = vmatprep.subr.mxu0 0.0
  %80 = vmatpush1.msra.mxu0 0.0
  %81 = vmatprep.subr.mxu0 0.0
  %82 = vmatpush1.msra.mxu0 0.0
  %83 = vmatprep.subr.mxu0 0.0
  %84 = vmatpush1.msra.mxu0 0.0
  %85 = vmatprep.subr.mxu0 0.0
  %86 = vmatpush1.msra.mxu0 0.0
  %87 = vmatprep.subr.mxu0 0.0
  %88 = vmatpush1.msra.mxu0 0.0
  %89 = vmatprep.subr.mxu0 0.0
  %90 = vmatpush1.msra.mxu0 0.0
  %91 = vmatprep.subr.mxu0 0.0
  %92 = vmatpush1.msra.mxu0 0.0
  %93 = vmatprep.subr.mxu0 0.0
  %94 = vmatpush1.msra.mxu0 0.0
  %95 = vmatprep.subr.mxu0 0.0
  %96 = vmatpush1.msra.mxu0 0.0
  %97 = vmatprep.subr.mxu0 0.0
  %98 = vmatpush1.msra.mxu0 0.0
  %99 = vmatprep.subr.mxu0 0.0
  %100 = vmatpush1.msra.mxu0 0.0
  %101 = vmatprep.subr.mxu0 0.0
  %102 = vmatpush1.msra.mxu0 0.0
  %103 = vmatprep.subr.mxu0 0.0
  %104 = vmatpush1.msra.mxu0 0.0
  %105 = vmatprep.subr.mxu0 0.0
  %106 = vmatpush1.msra.mxu0 0.0
  %107 = vmatprep.subr.mxu0 0.0
  %108 = vmatpush1.msra.mxu0 0.0
  %109 = vmatprep.subr.mxu0 0.0
  %110 = vmatpush1.msra.mxu0 0.0
  %111 = vmatprep.subr.mxu0 0.0
  %112 = vmatpush1.msra.mxu0 0.0
  %113 = vmatprep.subr.mxu0 0.0
  %114 = vmatpush1.msra.mxu0 0.0
  %115 = vmatprep.subr.mxu0 0.0
  %116 = vmatpush1.msra.mxu0 0.0
  %117 = vmatprep.subr.mxu0 0.0
  %118 = vmatpush1.msra.mxu0 0.0
  %119 = vmatprep.subr.mxu0 0.0
  %120 = vmatpush1.msra.mxu0 0.0
  %121 = vmatprep.subr.mxu0 0.0
  %122 = vmatpush1.msra.mxu0 0.0
  %123 = vmatprep.subr.mxu0 0.0
  %124 = vmatpush1.msra.mxu0 0.0
  %125 = vmatprep.subr.mxu0 0.0
  %126 = vmatpush1.msra.mxu0 0.0
  %127 = vmatprep.subr.mxu0 0.0
  %128 = vmatpush1.msra.mxu0 0.0
  %129 = vmatprep.mubr.f32.mxu0 0.0
  %130 = vmatmul.mubr.f32.gmra.mrb[0].mxu0 %v41
  %v131 = vpop.f32.mrb[0].mxu0
  %v132 = vadd.f32 0.0, %v131
  %v133 = vpop.f32.mrb[0].mxu0
  %134 = vmatprep.mubr.f32.mxu0 0.0
  %135 = vmatmul.mubr.f32.gmra.mrb[0].mxu0 %v44
  %v136 = vpop.f32.mrb[0].mxu0
  %v137 = vadd.f32 0.0, %v136
  %v138 = vpop.f32.mrb[0].mxu0
  %139 = vmatprep.mubr.f32.mxu0 0.0
  %140 = vmatmul.mubr.f32.gmra.mrb[0].mxu0 %v47
  %v141 = vpop.f32.mrb[0].mxu0
  %v142 = vadd.f32 0.0, %v141
  %v143 = vpop.f32.mrb[0].mxu0
  %144 = vmatprep.mubr.f32.mxu0 0.0
  %145 = vmatmul.mubr.f32.gmra.mrb[0].mxu0 %v50
  %v146 = vpop.f32.mrb[0].mxu0
  %v147 = vadd.f32 0.0, %v146
  %v148 = vpop.f32.mrb[0].mxu0
  %149 = vmatprep.mubr.f32.mxu0 0.0
  %150 = vmatmul.mubr.f32.gmra.mrb[0].mxu0 %v53
  %v151 = vpop.f32.mrb[0].mxu0
  %v152 = vadd.f32 0.0, %v151
  %v153 = vpop.f32.mrb[0].mxu0
  %154 = vmatprep.mubr.f32.mxu0 0.0
  %155 = vmatmul.mubr.f32.gmra.mrb[0].mxu0 %v56
  %v156 = vpop.f32.mrb[0].mxu0
  %v157 = vadd.f32 0.0, %v156
  %v158 = vpop.f32.mrb[0].mxu0
  %159 = vmatprep.mubr.f32.mxu0 0.0
  %160 = vmatmul.mubr.f32.gmra.mrb[0].mxu0 %v59
  %v161 = vpop.f32.mrb[0].mxu0
  %v162 = vadd.f32 0.0, %v161
  %v163 = vpop.f32.mrb[0].mxu0
  %164 = vdwg.mxu0
  %v165 = vlaneseq
  %v166 = vshrl.u32 %v165, 7
  %v167 = vadd.s32 %v166, 8
  %v168 = vadd.s32 %v166, 16
  %v169 = vadd.s32 %v166, 24
  %v170 = vadd.s32 %v166, 32
  %v171 = vadd.s32 %v166, 40
  %v172 = vadd.s32 %v166, 48
  %v173 = vcvt.s32.f32 %v166
  %v174 = vcvt.s32.f32 %v167
  %v175 = vcvt.s32.f32 %v168
  %v176 = vcvt.s32.f32 %v169
  %v177 = vcvt.s32.f32 %v170
  %v178 = vcvt.s32.f32 %v171
  %v179 = vcvt.s32.f32 %v172
  %v180 = vadd.f32 %v173, 0.5
  %v181 = vadd.f32 %v174, 0.5
  %v182 = vadd.f32 %v175, 0.5
  %v183 = vadd.f32 %v176, 0.5
  %v184 = vadd.f32 %v177, 0.5
  %v185 = vadd.f32 %v178, 0.5
  %v186 = vadd.f32 %v179, 0.5
  %v187 = vmul.f32 %v180, 0.14285715
  %v188 = vmul.f32 %v181, 0.14285715
  %v189 = vmul.f32 %v182, 0.14285715
  %v190 = vmul.f32 %v183, 0.14285715
  %v191 = vmul.f32 %v184, 0.14285715
  %v192 = vmul.f32 %v185, 0.14285715
  %v193 = vmul.f32 %v186, 0.14285715
  %v194 = vfloor.f32 %v187
  %v195 = vfloor.f32 %v188
  %v196 = vfloor.f32 %v189
  %v197 = vfloor.f32 %v190
  %v198 = vfloor.f32 %v191
  %v199 = vfloor.f32 %v192
  %v200 = vfloor.f32 %v193
  %v201 = vlaneseq
  %v202 = vand.u32 %v201, 127
  %v203 = vcvt.s32.f32 %v202
  %v204 = vadd.f32 %v203, 0.5
  %v205 = vmul.f32 %v204, 0.14285715
  %v206 = vfloor.f32 %v205
  %vm207 = vcmp.eq.f32.partialorder %v194, %v206
  %vm208 = vcmp.eq.f32.partialorder %v195, %v206
  %vm209 = vcmp.eq.f32.partialorder %v196, %v206
  %vm210 = vcmp.eq.f32.partialorder %v197, %v206
  %vm211 = vcmp.eq.f32.partialorder %v198, %v206
  %vm212 = vcmp.eq.f32.partialorder %v199, %v206
  %vm213 = vcmp.eq.f32.partialorder %v200, %v206
  %v214 = vsel %vm207, 0.0, -1e+30
  %v215 = vsel %vm208, 0.0, -1e+30
  %v216 = vsel %vm209, 0.0, -1e+30
  %v217 = vsel %vm210, 0.0, -1e+30
  %v218 = vsel %vm211, 0.0, -1e+30
  %v219 = vsel %vm212, 0.0, -1e+30
  %v220 = vsel %vm213, 0.0, -1e+30
  %v221 = vld [vmem:[%s2] sm:$0xff]
  %v222 = vld [vmem:[%s2 + $0x8] sm:$0xff]
  %v223 = vld [vmem:[%s2 + $0x10] sm:$0xff]
  %v224 = vld [vmem:[%s2 + $0x18] sm:$0xff]
  %v225 = vld [vmem:[%s2 + $0x20] sm:$0xff]
  %v226 = vld [vmem:[%s2 + $0x28] sm:$0xff]
  %v227 = vld [vmem:[%s2 + $0x30] sm:$0xff]
  %v228 = vld [vmem:[%s2 + $0x38] sm:$0xff]
  %v229 = vld [vmem:[%s2 + $0x40] sm:$0xff]
  %v230 = vld [vmem:[%s2 + $0x48] sm:$0xff]
  %v231 = vld [vmem:[%s2 + $0x50] sm:$0xff]
  %v232 = vld [vmem:[%s2 + $0x58] sm:$0xff]
  %v233 = vld [vmem:[%s2 + $0x60] sm:$0xff]
  %v234 = vld [vmem:[%s2 + $0x68] sm:$0xff]
  %v235 = vld [vmem:[%s2 + $0x70] sm:$0xff]
  %v236 = vld [vmem:[%s2 + $0x78] sm:$0xff]
  %vm237 = vcmask 523264
  %v239 = vsel %vm237, %v132, 0
  %v242 = vsel %vm237, %v137, 0
  %v245 = vsel %vm237, %v142, 0
  %v248 = vsel %vm237, %v147, 0
  %v251 = vsel %vm237, %v152, 0
  %v254 = vsel %vm237, %v157, 0
  %v257 = vsel %vm237, %v162, 0
  %259 = vmatprep.subr.mxu0 %v222
  %260 = vmatpush1.msra.mxu0 %v221
  %261 = vmatprep.subr.mxu0 %v224
  %262 = vmatpush1.msra.mxu0 %v223
  %263 = vmatprep.subr.mxu0 %v226
  %264 = vmatpush1.msra.mxu0 %v225
  %265 = vmatprep.subr.mxu0 %v228
  %266 = vmatpush1.msra.mxu0 %v227
  %267 = vmatprep.subr.mxu0 %v230
  %268 = vmatpush1.msra.mxu0 %v229
  %269 = vmatprep.subr.mxu0 %v232
  %270 = vmatpush1.msra.mxu0 %v231
  %271 = vmatprep.subr.mxu0 %v234
  %272 = vmatpush1.msra.mxu0 %v233
  %273 = vmatprep.subr.mxu0 %v236
  %274 = vmatpush1.msra.mxu0 %v235
  %275 = vmatprep.subr.mxu0 0.0
  %276 = vmatpush1.msra.mxu0 0.0
  %277 = vmatprep.subr.mxu0 0.0
  %278 = vmatpush1.msra.mxu0 0.0
  %279 = vmatprep.subr.mxu0 0.0
  %280 = vmatpush1.msra.mxu0 0.0
  %281 = vmatprep.subr.mxu0 0.0
  %282 = vmatpush1.msra.mxu0 0.0
  %283 = vmatprep.subr.mxu0 0.0
  %284 = vmatpush1.msra.mxu0 0.0
  %285 = vmatprep.subr.mxu0 0.0
  %286 = vmatpush1.msra.mxu0 0.0
  %287 = vmatprep.subr.mxu0 0.0
  %288 = vmatpush1.msra.mxu0 0.0
  %289 = vmatprep.subr.mxu0 0.0
  %290 = vmatpush1.msra.mxu0 0.0
  %291 = vmatprep.subr.mxu0 0.0
  %292 = vmatpush1.msra.mxu0 0.0
  %293 = vmatprep.subr.mxu0 0.0
  %294 = vmatpush1.msra.mxu0 0.0
  %295 = vmatprep.subr.mxu0 0.0
  %296 = vmatpush1.msra.mxu0 0.0
  %297 = vmatprep.subr.mxu0 0.0
  %298 = vmatpush1.msra.mxu0 0.0
  %299 = vmatprep.subr.mxu0 0.0
  %300 = vmatpush1.msra.mxu0 0.0
  %301 = vmatprep.subr.mxu0 0.0
  %302 = vmatpush1.msra.mxu0 0.0
  %303 = vmatprep.subr.mxu0 0.0
  %304 = vmatpush1.msra.mxu0 0.0
  %305 = vmatprep.subr.mxu0 0.0
  %306 = vmatpush1.msra.mxu0 0.0
  %307 = vmatprep.subr.mxu0 0.0
  %308 = vmatpush1.msra.mxu0 0.0
  %309 = vmatprep.subr.mxu0 0.0
  %310 = vmatpush1.msra.mxu0 0.0
  %311 = vmatprep.subr.mxu0 0.0
  %312 = vmatpush1.msra.mxu0 0.0
  %313 = vmatprep.subr.mxu0 0.0
  %314 = vmatpush1.msra.mxu0 0.0
  %315 = vmatprep.subr.mxu0 0.0
  %316 = vmatpush1.msra.mxu0 0.0
  %317 = vmatprep.subr.mxu0 0.0
  %318 = vmatpush1.msra.mxu0 0.0
  %319 = vmatprep.subr.mxu0 0.0
  %320 = vmatpush1.msra.mxu0 0.0
  %321 = vmatprep.subr.mxu0 0.0
  %322 = vmatpush1.msra.mxu0 0.0
  %323 = vmatprep.mubr.f32.mxu0 0.0
  %324 = vmatmul.mubr.f32.gmra.mrb[0].mxu0 %v239
  %v325 = vpop.f32.mrb[0].mxu0
  %v326 = vadd.f32 0.0, %v325
  %v327 = vpop.f32.mrb[0].mxu0
  %v328 = vadd.f32 0.0, %v327
  %329 = vmatprep.mubr.f32.mxu0 0.0
  %330 = vmatmul.mubr.f32.gmra.mrb[0].mxu0 %v242
  %v331 = vpop.f32.mrb[0].mxu0
  %v332 = vadd.f32 0.0, %v331
  %v333 = vpop.f32.mrb[0].mxu0
  %v334 = vadd.f32 0.0, %v333
  %335 = vmatprep.mubr.f32.mxu0 0.0
  %336 = vmatmul.mubr.f32.gmra.mrb[0].mxu0 %v245
  %v337 = vpop.f32.mrb[0].mxu0
  %v338 = vadd.f32 0.0, %v337
  %v339 = vpop.f32.mrb[0].mxu0
  %v340 = vadd.f32 0.0, %v339
  %341 = vmatprep.mubr.f32.mxu0 0.0
  %342 = vmatmul.mubr.f32.gmra.mrb[0].mxu0 %v248
  %v343 = vpop.f32.mrb[0].mxu0
  %v344 = vadd.f32 0.0, %v343
  %v345 = vpop.f32.mrb[0].mxu0
  %v346 = vadd.f32 0.0, %v345
  %347 = vmatprep.mubr.f32.mxu0 0.0
  %348 = vmatmul.mubr.f32.gmra.mrb[0].mxu0 %v251
  %v349 = vpop.f32.mrb[0].mxu0
  %v350 = vadd.f32 0.0, %v349
  %v351 = vpop.f32.mrb[0].mxu0
  %v352 = vadd.f32 0.0, %v351
  %353 = vmatprep.mubr.f32.mxu0 0.0
  %354 = vmatmul.mubr.f32.gmra.mrb[0].mxu0 %v254
  %v355 = vpop.f32.mrb[0].mxu0
  %v356 = vadd.f32 0.0, %v355
  %v357 = vpop.f32.mrb[0].mxu0
  %v358 = vadd.f32 0.0, %v357
  %359 = vmatprep.mubr.f32.mxu0 0.0
  %360 = vmatmul.mubr.f32.gmra.mrb[0].mxu0 %v257
  %v361 = vpop.f32.mrb[0].mxu0
  %v362 = vadd.f32 0.0, %v361
  %v363 = vpop.f32.mrb[0].mxu0
  %v364 = vadd.f32 0.0, %v363
  %365 = vdwg.mxu0
  %v366 = vld [vmem:[%s3] sm:$0xff]
  %v367 = vld [vmem:[%s3 + $0x8] sm:$0xff]
  %v368 = vld [vmem:[%s3 + $0x10] sm:$0xff]
  %v369 = vld [vmem:[%s3 + $0x18] sm:$0xff]
  %v370 = vld [vmem:[%s3 + $0x20] sm:$0xff]
  %v371 = vld [vmem:[%s3 + $0x28] sm:$0xff]
  %v372 = vld [vmem:[%s3 + $0x30] sm:$0xff]
  %v373 = vld [vmem:[%s3 + $0x38] sm:$0xff]
  %v374 = vld [vmem:[%s3 + $0x40] sm:$0xff]
  %v375 = vld [vmem:[%s3 + $0x48] sm:$0xff]
  %v376 = vld [vmem:[%s3 + $0x50] sm:$0xff]
  %v377 = vld [vmem:[%s3 + $0x58] sm:$0xff]
  %v378 = vld [vmem:[%s3 + $0x60] sm:$0xff]
  %v379 = vld [vmem:[%s3 + $0x68] sm:$0xff]
  %v380 = vld [vmem:[%s3 + $0x70] sm:$0xff]
  %v381 = vld [vmem:[%s3 + $0x78] sm:$0xff]
  %382 = vmatprep.subr.mxu0 %v367
  %383 = vmatpush1.msra.mxu0 %v366
  %384 = vmatprep.subr.mxu0 %v369
  %385 = vmatpush1.msra.mxu0 %v368
  %386 = vmatprep.subr.mxu0 %v371
  %387 = vmatpush1.msra.mxu0 %v370
  %388 = vmatprep.subr.mxu0 %v373
  %389 = vmatpush1.msra.mxu0 %v372
  %390 = vmatprep.subr.mxu0 %v375
  %391 = vmatpush1.msra.mxu0 %v374
  %392 = vmatprep.subr.mxu0 %v377
  %393 = vmatpush1.msra.mxu0 %v376
  %394 = vmatprep.subr.mxu0 %v379
  %395 = vmatpush1.msra.mxu0 %v378
  %396 = vmatprep.subr.mxu0 %v381
  %397 = vmatpush1.msra.mxu0 %v380
  %398 = vmatprep.subr.mxu0 0.0
  %399 = vmatpush1.msra.mxu0 0.0
  %400 = vmatprep.subr.mxu0 0.0
  %401 = vmatpush1.msra.mxu0 0.0
  %402 = vmatprep.subr.mxu0 0.0
  %403 = vmatpush1.msra.mxu0 0.0
  %404 = vmatprep.subr.mxu0 0.0
  %405 = vmatpush1.msra.mxu0 0.0
  %406 = vmatprep.subr.mxu0 0.0
  %407 = vmatpush1.msra.mxu0 0.0
  %408 = vmatprep.subr.mxu0 0.0
  %409 = vmatpush1.msra.mxu0 0.0
  %410 = vmatprep.subr.mxu0 0.0
  %411 = vmatpush1.msra.mxu0 0.0
  %412 = vmatprep.subr.mxu0 0.0
  %413 = vmatpush1.msra.mxu0 0.0
  %414 = vmatprep.subr.mxu0 0.0
  %415 = vmatpush1.msra.mxu0 0.0
  %416 = vmatprep.subr.mxu0 0.0
  %417 = vmatpush1.msra.mxu0 0.0
  %418 = vmatprep.subr.mxu0 0.0
  %419 = vmatpush1.msra.mxu0 0.0
  %420 = vmatprep.subr.mxu0 0.0
  %421 = vmatpush1.msra.mxu0 0.0
  %422 = vmatprep.subr.mxu0 0.0
  %423 = vmatpush1.msra.mxu0 0.0
  %424 = vmatprep.subr.mxu0 0.0
  %425 = vmatpush1.msra.mxu0 0.0
  %426 = vmatprep.subr.mxu0 0.0
  %427 = vmatpush1.msra.mxu0 0.0
  %428 = vmatprep.subr.mxu0 0.0
  %429 = vmatpush1.msra.mxu0 0.0
  %430 = vmatprep.subr.mxu0 0.0
  %431 = vmatpush1.msra.mxu0 0.0
  %432 = vmatprep.subr.mxu0 0.0
  %433 = vmatpush1.msra.mxu0 0.0
  %434 = vmatprep.subr.mxu0 0.0
  %435 = vmatpush1.msra.mxu0 0.0
  %436 = vmatprep.subr.mxu0 0.0
  %437 = vmatpush1.msra.mxu0 0.0
  %438 = vmatprep.subr.mxu0 0.0
  %439 = vmatpush1.msra.mxu0 0.0
  %440 = vmatprep.subr.mxu0 0.0
  %441 = vmatpush1.msra.mxu0 0.0
  %442 = vmatprep.subr.mxu0 0.0
  %443 = vmatpush1.msra.mxu0 0.0
  %444 = vmatprep.subr.mxu0 0.0
  %445 = vmatpush1.msra.mxu0 0.0
  %446 = vmatprep.mubr.f32.mxu0 0.0
  %447 = vmatmul.mubr.f32.gmra.mrb[0].mxu0 %v239
  %v448 = vpop.f32.mrb[0].mxu0
  %v449 = vadd.f32 0.0, %v448
  %v450 = vpop.f32.mrb[0].mxu0
  %v451 = vadd.f32 0.0, %v450
  %452 = vmatprep.mubr.f32.mxu0 0.0
  %453 = vmatmul.mubr.f32.gmra.mrb[0].mxu0 %v242
  %v454 = vpop.f32.mrb[0].mxu0
  %v455 = vadd.f32 0.0, %v454
  %v456 = vpop.f32.mrb[0].mxu0
  %v457 = vadd.f32 0.0, %v456
  %458 = vmatprep.mubr.f32.mxu0 0.0
  %459 = vmatmul.mubr.f32.gmra.mrb[0].mxu0 %v245
  %v460 = vpop.f32.mrb[0].mxu0
  %v461 = vadd.f32 0.0, %v460
  %v462 = vpop.f32.mrb[0].mxu0
  %v463 = vadd.f32 0.0, %v462
  %464 = vmatprep.mubr.f32.mxu0 0.0
  %465 = vmatmul.mubr.f32.gmra.mrb[0].mxu0 %v248
  %v466 = vpop.f32.mrb[0].mxu0
  %v467 = vadd.f32 0.0, %v466
  %v468 = vpop.f32.mrb[0].mxu0
  %v469 = vadd.f32 0.0, %v468
  %470 = vmatprep.mubr.f32.mxu0 0.0
  %471 = vmatmul.mubr.f32.gmra.mrb[0].mxu0 %v251
  %v472 = vpop.f32.mrb[0].mxu0
  %v473 = vadd.f32 0.0, %v472
  %v474 = vpop.f32.mrb[0].mxu0
  %v475 = vadd.f32 0.0, %v474
  %476 = vmatprep.mubr.f32.mxu0 0.0
  %477 = vmatmul.mubr.f32.gmra.mrb[0].mxu0 %v254
  %v478 = vpop.f32.mrb[0].mxu0
  %v479 = vadd.f32 0.0, %v478
  %v480 = vpop.f32.mrb[0].mxu0
  %v481 = vadd.f32 0.0, %v480
  %482 = vmatprep.mubr.f32.mxu0 0.0
  %483 = vmatmul.mubr.f32.gmra.mrb[0].mxu0 %v257
  %v484 = vpop.f32.mrb[0].mxu0
  %v485 = vadd.f32 0.0, %v484
  %v486 = vpop.f32.mrb[0].mxu0
  %v487 = vadd.f32 0.0, %v486
  %488 = vdwg.mxu0
  %v490 = vsel %vm237, %v326, 0
  %v493 = vsel %vm237, %v332, 0
  %v496 = vsel %vm237, %v338, 0
  %v499 = vsel %vm237, %v344, 0
  %v502 = vsel %vm237, %v350, 0
  %v505 = vsel %vm237, %v356, 0
  %v508 = vsel %vm237, %v362, 0
  %510 = vmatprep.subr.mxu0 0.0
  %511 = vmatpush1.xpose.msra.mxu0 %v239
  %512 = vmatprep.subr.mxu0 0.0
  %513 = vmatpush1.xpose.msra.mxu0 %v242
  %514 = vmatprep.subr.mxu0 0.0
  %515 = vmatpush1.xpose.msra.mxu0 %v245
  %516 = vmatprep.subr.mxu0 0.0
  %517 = vmatpush1.xpose.msra.mxu0 %v248
  %518 = vmatprep.subr.mxu0 0.0
  %519 = vmatpush1.xpose.msra.mxu0 %v251
  %520 = vmatprep.subr.mxu0 0.0
  %521 = vmatpush1.xpose.msra.mxu0 %v254
  %522 = vmatprep.subr.mxu0 0.0
  %523 = vmatpush1.xpose.msra.mxu0 %v257
  %524 = vmatprep.subr.mxu0 0.0
  %525 = vmatpush1.xpose.msra.mxu0 0.0
  %526 = vmatprep.subr.mxu0 0.0
  %527 = vmatpush1.xpose.msra.mxu0 0.0
  %528 = vmatprep.subr.mxu0 0.0
  %529 = vmatpush1.xpose.msra.mxu0 0.0
  %530 = vmatprep.subr.mxu0 0.0
  %531 = vmatpush1.xpose.msra.mxu0 0.0
  %532 = vmatprep.subr.mxu0 0.0
  %533 = vmatpush1.xpose.msra.mxu0 0.0
  %534 = vmatprep.subr.mxu0 0.0
  %535 = vmatpush1.xpose.msra.mxu0 0.0
  %536 = vmatprep.subr.mxu0 0.0
  %537 = vmatpush1.xpose.msra.mxu0 0.0
  %538 = vmatprep.subr.mxu0 0.0
  %539 = vmatpush1.xpose.msra.mxu0 0.0
  %540 = vmatprep.subr.mxu0 0.0
  %541 = vmatpush1.xpose.msra.mxu0 0.0
  %542 = vmatprep.subr.mxu0 0.0
  %543 = vmatpush1.xpose.msra.mxu0 0.0
  %544 = vmatprep.subr.mxu0 0.0
  %545 = vmatpush1.xpose.msra.mxu0 0.0
  %546 = vmatprep.subr.mxu0 0.0
  %547 = vmatpush1.xpose.msra.mxu0 0.0
  %548 = vmatprep.subr.mxu0 0.0
  %549 = vmatpush1.xpose.msra.mxu0 0.0
  %550 = vmatprep.subr.mxu0 0.0
  %551 = vmatpush1.xpose.msra.mxu0 0.0
  %552 = vmatprep.subr.mxu0 0.0
  %553 = vmatpush1.xpose.msra.mxu0 0.0
  %554 = vmatprep.subr.mxu0 0.0
  %555 = vmatpush1.xpose.msra.mxu0 0.0
  %556 = vmatprep.subr.mxu0 0.0
  %557 = vmatpush1.xpose.msra.mxu0 0.0
  %558 = vmatprep.subr.mxu0 0.0
  %559 = vmatpush1.xpose.msra.mxu0 0.0
  %560 = vmatprep.subr.mxu0 0.0
  %561 = vmatpush1.xpose.msra.mxu0 0.0
  %562 = vmatprep.subr.mxu0 0.0
  %563 = vmatpush1.xpose.msra.mxu0 0.0
  %564 = vmatprep.subr.mxu0 0.0
  %565 = vmatpush1.xpose.msra.mxu0 0.0
  %566 = vmatprep.subr.mxu0 0.0
  %567 = vmatpush1.xpose.msra.mxu0 0.0
  %568 = vmatprep.subr.mxu0 0.0
  %569 = vmatpush1.xpose.msra.mxu0 0.0
  %570 = vmatprep.subr.mxu0 0.0
  %571 = vmatpush1.xpose.msra.mxu0 0.0
  %572 = vmatprep.subr.mxu0 0.0
  %573 = vmatpush1.xpose.msra.mxu0 0.0
  %574 = vmatprep.mubr.f32.mxu0 0.0
  %575 = vmatmul.mubr.f32.gmra.mrb[0].mxu0 %v490
  %v576 = vpop.f32.mrb[0].mxu0
  %v577 = vadd.f32 %v214, %v576
  %v578 = vpop.f32.mrb[0].mxu0
  %579 = vmatprep.mubr.f32.mxu0 0.0
  %580 = vmatmul.mubr.f32.gmra.mrb[0].mxu0 %v493
  %v581 = vpop.f32.mrb[0].mxu0
  %v582 = vadd.f32 %v215, %v581
  %v583 = vpop.f32.mrb[0].mxu0
  %584 = vmatprep.mubr.f32.mxu0 0.0
  %585 = vmatmul.mubr.f32.gmra.mrb[0].mxu0 %v496
  %v586 = vpop.f32.mrb[0].mxu0
  %v587 = vadd.f32 %v216, %v586
  %v588 = vpop.f32.mrb[0].mxu0
  %589 = vmatprep.mubr.f32.mxu0 0.0
  %590 = vmatmul.mubr.f32.gmra.mrb[0].mxu0 %v499
  %v591 = vpop.f32.mrb[0].mxu0
  %v592 = vadd.f32 %v217, %v591
  %v593 = vpop.f32.mrb[0].mxu0
  %594 = vmatprep.mubr.f32.mxu0 0.0
  %595 = vmatmul.mubr.f32.gmra.mrb[0].mxu0 %v502
  %v596 = vpop.f32.mrb[0].mxu0
  %v597 = vadd.f32 %v218, %v596
  %v598 = vpop.f32.mrb[0].mxu0
  %599 = vmatprep.mubr.f32.mxu0 0.0
  %600 = vmatmul.mubr.f32.gmra.mrb[0].mxu0 %v505
  %v601 = vpop.f32.mrb[0].mxu0
  %v602 = vadd.f32 %v219, %v601
  %v603 = vpop.f32.mrb[0].mxu0
  %604 = vmatprep.mubr.f32.mxu0 0.0
  %605 = vmatmul.mubr.f32.gmra.mrb[0].mxu0 %v508
  %v606 = vpop.f32.mrb[0].mxu0
  %v607 = vadd.f32 %v220, %v606
  %v608 = vpop.f32.mrb[0].mxu0
  %609 = vdwg.mxu0
  %vm610 = vcmask 457728
  %v611 = vsel %vm610, %v577, -inf
  %v612 = vsel %vm610, %v582, -inf
  %v613 = vsel %vm610, %v587, -inf
  %v614 = vsel %vm610, %v592, -inf
  %v615 = vsel %vm610, %v597, -inf
  %v616 = vmax.f32 %v611, %v615
  %v617 = vsel %vm610, %v602, -inf
  %v618 = vmax.f32 %v612, %v617
  %v619 = vsel %vm610, %v607, -inf
  %v620 = vmax.f32 %v613, %v619
  %v621 = vmax.f32 %v616, %v618
  %v622 = vmax.f32 %v620, %v614
  %v623 = vmax.f32 %v621, %v622
  %v624 = vrot.slane %v623, 4
  %v625 = vmax.f32 %v623, %v624
  %v626 = vrot.slane %v625, 2
  %v627 = vmax.f32 %v625, %v626
  %v628 = vrot.slane %v627, 1
  %v629 = vmax.f32 %v627, %v628
  %v630 = vsub.f32 %v577, %v629
  %v631 = vsub.f32 %v582, %v629
  %v632 = vsub.f32 %v587, %v629
  %v633 = vsub.f32 %v592, %v629
  %v634 = vsub.f32 %v597, %v629
  %v635 = vsub.f32 %v602, %v629
  %v636 = vsub.f32 %v607, %v629
  %v637 = vmul.f32 %v630, 1.442695
  %v638 = vpow.pop %v637
  %v639 = vmul.f32 %v631, 1.442695
  %v640 = vpow.pop %v639
  %v641 = vmul.f32 %v632, 1.442695
  %v642 = vpow.pop %v641
  %v643 = vmul.f32 %v633, 1.442695
  %v644 = vpow.pop %v643
  %v645 = vmul.f32 %v634, 1.442695
  %v646 = vpow.pop %v645
  %v647 = vmul.f32 %v635, 1.442695
  %v648 = vpow.pop %v647
  %v649 = vmul.f32 %v636, 1.442695
  %v650 = vpow.pop %v649
  %v651 = vsel %vm610, %v638, 0.0
  %v652 = vsel %vm610, %v640, 0.0
  %v653 = vadd.f32 %v651, %v652
  %v654 = vsel %vm610, %v642, 0.0
  %v655 = vadd.f32 %v653, %v654
  %v656 = vsel %vm610, %v644, 0.0
  %v657 = vadd.f32 %v655, %v656
  %v658 = vsel %vm610, %v646, 0.0
  %v659 = vadd.f32 %v657, %v658
  %v660 = vsel %vm610, %v648, 0.0
  %v661 = vadd.f32 %v659, %v660
  %v662 = vsel %vm610, %v650, 0.0
  %v663 = vadd.f32 %v661, %v662
  %v664 = vrot.slane %v663, 4
  %v665 = vadd.f32 %v663, %v664
  %v666 = vrot.slane %v665, 2
  %v667 = vadd.f32 %v665, %v666
  %v668 = vrot.slane %v667, 1
  %v669 = vadd.f32 %v667, %v668
  %v670 = vrcp.pop %v669
  %v671 = vmul.f32 %v638, %v670
  %v672 = vmul.f32 %v640, %v670
  %v673 = vmul.f32 %v642, %v670
  %v674 = vmul.f32 %v644, %v670
  %v675 = vmul.f32 %v646, %v670
  %v676 = vmul.f32 %v648, %v670
  %v677 = vmul.f32 %v650, %v670
  %678 = vrot.lane.b32.xlu0 %v326, 64
  %v679 = vpop.permute.xlu0 %678
  %680 = vrot.lane.b32.xlu0 %v332, 64
  %v681 = vpop.permute.xlu0 %680
  %682 = vrot.lane.b32.xlu0 %v338, 64
  %v683 = vpop.permute.xlu0 %682
  %684 = vrot.lane.b32.xlu0 %v344, 64
  %v685 = vpop.permute.xlu0 %684
  %686 = vrot.lane.b32.xlu0 %v350, 64
  %v687 = vpop.permute.xlu0 %686
  %688 = vrot.lane.b32.xlu0 %v356, 64
  %v689 = vpop.permute.xlu0 %688
  %690 = vrot.lane.b32.xlu0 %v362, 64
  %v691 = vpop.permute.xlu0 %690
  %v692 = vsel %vm237, %v679, 0
  %v694 = vsel %vm237, %v681, 0
  %v696 = vsel %vm237, %v683, 0
  %v698 = vsel %vm237, %v685, 0
  %v700 = vsel %vm237, %v687, 0
  %v702 = vsel %vm237, %v689, 0
  %v704 = vsel %vm237, %v691, 0
  %706 = vmatprep.subr.mxu0 0.0
  %707 = vmatpush1.xpose.msra.mxu0 %v239
  %708 = vmatprep.subr.mxu0 0.0
  %709 = vmatpush1.xpose.msra.mxu0 %v242
  %710 = vmatprep.subr.mxu0 0.0
  %711 = vmatpush1.xpose.msra.mxu0 %v245
  %712 = vmatprep.subr.mxu0 0.0
  %713 = vmatpush1.xpose.msra.mxu0 %v248
  %714 = vmatprep.subr.mxu0 0.0
  %715 = vmatpush1.xpose.msra.mxu0 %v251
  %716 = vmatprep.subr.mxu0 0.0
  %717 = vmatpush1.xpose.msra.mxu0 %v254
  %718 = vmatprep.subr.mxu0 0.0
  %719 = vmatpush1.xpose.msra.mxu0 %v257
  %720 = vmatprep.subr.mxu0 0.0
  %721 = vmatpush1.xpose.msra.mxu0 0.0
  %722 = vmatprep.subr.mxu0 0.0
  %723 = vmatpush1.xpose.msra.mxu0 0.0
  %724 = vmatprep.subr.mxu0 0.0
  %725 = vmatpush1.xpose.msra.mxu0 0.0
  %726 = vmatprep.subr.mxu0 0.0
  %727 = vmatpush1.xpose.msra.mxu0 0.0
  %728 = vmatprep.subr.mxu0 0.0
  %729 = vmatpush1.xpose.msra.mxu0 0.0
  %730 = vmatprep.subr.mxu0 0.0
  %731 = vmatpush1.xpose.msra.mxu0 0.0
  %732 = vmatprep.subr.mxu0 0.0
  %733 = vmatpush1.xpose.msra.mxu0 0.0
  %734 = vmatprep.subr.mxu0 0.0
  %735 = vmatpush1.xpose.msra.mxu0 0.0
  %736 = vmatprep.subr.mxu0 0.0
  %737 = vmatpush1.xpose.msra.mxu0 0.0
  %738 = vmatprep.subr.mxu0 0.0
  %739 = vmatpush1.xpose.msra.mxu0 0.0
  %740 = vmatprep.subr.mxu0 0.0
  %741 = vmatpush1.xpose.msra.mxu0 0.0
  %742 = vmatprep.subr.mxu0 0.0
  %743 = vmatpush1.xpose.msra.mxu0 0.0
  %744 = vmatprep.subr.mxu0 0.0
  %745 = vmatpush1.xpose.msra.mxu0 0.0
  %746 = vmatprep.subr.mxu0 0.0
  %747 = vmatpush1.xpose.msra.mxu0 0.0
  %748 = vmatprep.subr.mxu0 0.0
  %749 = vmatpush1.xpose.msra.mxu0 0.0
  %750 = vmatprep.subr.mxu0 0.0
  %751 = vmatpush1.xpose.msra.mxu0 0.0
  %752 = vmatprep.subr.mxu0 0.0
  %753 = vmatpush1.xpose.msra.mxu0 0.0
  %754 = vmatprep.subr.mxu0 0.0
  %755 = vmatpush1.xpose.msra.mxu0 0.0
  %756 = vmatprep.subr.mxu0 0.0
  %757 = vmatpush1.xpose.msra.mxu0 0.0
  %758 = vmatprep.subr.mxu0 0.0
  %759 = vmatpush1.xpose.msra.mxu0 0.0
  %760 = vmatprep.subr.mxu0 0.0
  %761 = vmatpush1.xpose.msra.mxu0 0.0
  %762 = vmatprep.subr.mxu0 0.0
  %763 = vmatpush1.xpose.msra.mxu0 0.0
  %764 = vmatprep.subr.mxu0 0.0
  %765 = vmatpush1.xpose.msra.mxu0 0.0
  %766 = vmatprep.subr.mxu0 0.0
  %767 = vmatpush1.xpose.msra.mxu0 0.0
  %768 = vmatprep.subr.mxu0 0.0
  %769 = vmatpush1.xpose.msra.mxu0 0.0
  %770 = vmatprep.mubr.f32.mxu0 0.0
  %771 = vmatmul.mubr.f32.gmra.mrb[0].mxu0 %v692
  %v772 = vpop.f32.mrb[0].mxu0
  %v773 = vadd.f32 %v214, %v772
  %v774 = vpop.f32.mrb[0].mxu0
  %775 = vmatprep.mubr.f32.mxu0 0.0
  %776 = vmatmul.mubr.f32.gmra.mrb[0].mxu0 %v694
  %v777 = vpop.f32.mrb[0].mxu0
  %v778 = vadd.f32 %v215, %v777
  %v779 = vpop.f32.mrb[0].mxu0
  %780 = vmatprep.mubr.f32.mxu0 0.0
  %781 = vmatmul.mubr.f32.gmra.mrb[0].mxu0 %v696
  %v782 = vpop.f32.mrb[0].mxu0
  %v783 = vadd.f32 %v216, %v782
  %v784 = vpop.f32.mrb[0].mxu0
  %785 = vmatprep.mubr.f32.mxu0 0.0
  %786 = vmatmul.mubr.f32.gmra.mrb[0].mxu0 %v698
  %v787 = vpop.f32.mrb[0].mxu0
  %v788 = vadd.f32 %v217, %v787
  %v789 = vpop.f32.mrb[0].mxu0
  %790 = vmatprep.mubr.f32.mxu0 0.0
  %791 = vmatmul.mubr.f32.gmra.mrb[0].mxu0 %v700
  %v792 = vpop.f32.mrb[0].mxu0
  %v793 = vadd.f32 %v218, %v792
  %v794 = vpop.f32.mrb[0].mxu0
  %795 = vmatprep.mubr.f32.mxu0 0.0
  %796 = vmatmul.mubr.f32.gmra.mrb[0].mxu0 %v702
  %v797 = vpop.f32.mrb[0].mxu0
  %v798 = vadd.f32 %v219, %v797
  %v799 = vpop.f32.mrb[0].mxu0
  %800 = vmatprep.mubr.f32.mxu0 0.0
  %801 = vmatmul.mubr.f32.gmra.mrb[0].mxu0 %v704
  %v802 = vpop.f32.mrb[0].mxu0
  %v803 = vadd.f32 %v220, %v802
  %v804 = vpop.f32.mrb[0].mxu0
  %805 = vdwg.mxu0
  %v806 = vsel %vm610, %v773, -inf
  %v807 = vsel %vm610, %v778, -inf
  %v808 = vsel %vm610, %v783, -inf
  %v809 = vsel %vm610, %v788, -inf
  %v810 = vsel %vm610, %v793, -inf
  %v811 = vmax.f32 %v806, %v810
  %v812 = vsel %vm610, %v798, -inf
  %v813 = vmax.f32 %v807, %v812
  %v814 = vsel %vm610, %v803, -inf
  %v815 = vmax.f32 %v808, %v814
  %v816 = vmax.f32 %v811, %v813
  %v817 = vmax.f32 %v815, %v809
  %v818 = vmax.f32 %v816, %v817
  %v819 = vrot.slane %v818, 4
  %v820 = vmax.f32 %v818, %v819
  %v821 = vrot.slane %v820, 2
  %v822 = vmax.f32 %v820, %v821
  %v823 = vrot.slane %v822, 1
  %v824 = vmax.f32 %v822, %v823
  %v825 = vsub.f32 %v773, %v824
  %v826 = vsub.f32 %v778, %v824
  %v827 = vsub.f32 %v783, %v824
  %v828 = vsub.f32 %v788, %v824
  %v829 = vsub.f32 %v793, %v824
  %v830 = vsub.f32 %v798, %v824
  %v831 = vsub.f32 %v803, %v824
  %v832 = vmul.f32 %v825, 1.442695
  %v833 = vpow.pop %v832
  %v834 = vmul.f32 %v826, 1.442695
  %v835 = vpow.pop %v834
  %v836 = vmul.f32 %v827, 1.442695
  %v837 = vpow.pop %v836
  %v838 = vmul.f32 %v828, 1.442695
  %v839 = vpow.pop %v838
  %v840 = vmul.f32 %v829, 1.442695
  %v841 = vpow.pop %v840
  %v842 = vmul.f32 %v830, 1.442695
  %v843 = vpow.pop %v842
  %v844 = vmul.f32 %v831, 1.442695
  %v845 = vpow.pop %v844
  %v846 = vsel %vm610, %v833, 0.0
  %v847 = vsel %vm610, %v835, 0.0
  %v848 = vadd.f32 %v846, %v847
  %v849 = vsel %vm610, %v837, 0.0
  %v850 = vadd.f32 %v848, %v849
  %v851 = vsel %vm610, %v839, 0.0
  %v852 = vadd.f32 %v850, %v851
  %v853 = vsel %vm610, %v841, 0.0
  %v854 = vadd.f32 %v852, %v853
  %v855 = vsel %vm610, %v843, 0.0
  %v856 = vadd.f32 %v854, %v855
  %v857 = vsel %vm610, %v845, 0.0
  %v858 = vadd.f32 %v856, %v857
  %v859 = vrot.slane %v858, 4
  %v860 = vadd.f32 %v858, %v859
  %v861 = vrot.slane %v860, 2
  %v862 = vadd.f32 %v860, %v861
  %v863 = vrot.slane %v862, 1
  %v864 = vadd.f32 %v862, %v863
  %v865 = vrcp.pop %v864
  %v866 = vmul.f32 %v833, %v865
  %v867 = vmul.f32 %v835, %v865
  %v868 = vmul.f32 %v837, %v865
  %v869 = vmul.f32 %v839, %v865
  %v870 = vmul.f32 %v841, %v865
  %v871 = vmul.f32 %v843, %v865
  %v872 = vmul.f32 %v845, %v865
  %880 = vrot.lane.b32.xlu0 %v449, 64
  %v881 = vpop.permute.xlu0 %880
  %882 = vrot.lane.b32.xlu0 %v455, 64
  %v883 = vpop.permute.xlu0 %882
  %884 = vrot.lane.b32.xlu0 %v461, 64
  %v885 = vpop.permute.xlu0 %884
  %886 = vrot.lane.b32.xlu0 %v467, 64
  %v887 = vpop.permute.xlu0 %886
  %888 = vrot.lane.b32.xlu0 %v473, 64
  %v889 = vpop.permute.xlu0 %888
  %890 = vrot.lane.b32.xlu0 %v479, 64
  %v891 = vpop.permute.xlu0 %890
  %892 = vrot.lane.b32.xlu0 %v485, 64
  %v893 = vpop.permute.xlu0 %892
  %v902 = vsel %vm610, %v866, 0
  %v905 = vsel %vm610, %v867, 0
  %v908 = vsel %vm610, %v868, 0
  %v911 = vsel %vm610, %v869, 0
  %v914 = vsel %vm610, %v870, 0
  %v917 = vsel %vm610, %v871, 0
  %v920 = vsel %vm610, %v872, 0
  %922 = vmatprep.subr.mxu0 0.0
  %923 = vmatpush1.msra.mxu0 %v881
  %924 = vmatprep.subr.mxu0 0.0
  %925 = vmatpush1.msra.mxu0 %v883
  %926 = vmatprep.subr.mxu0 0.0
  %927 = vmatpush1.msra.mxu0 %v885
  %928 = vmatprep.subr.mxu0 0.0
  %929 = vmatpush1.msra.mxu0 %v887
  %930 = vmatprep.subr.mxu0 0.0
  %931 = vmatpush1.msra.mxu0 %v889
  %932 = vmatprep.subr.mxu0 0.0
  %933 = vmatpush1.msra.mxu0 %v891
  %934 = vmatprep.subr.mxu0 0.0
  %935 = vmatpush1.msra.mxu0 %v893
  %936 = vmatprep.subr.mxu0 0.0
  %937 = vmatpush1.msra.mxu0 0.0
  %938 = vmatprep.subr.mxu0 0.0
  %939 = vmatpush1.msra.mxu0 0.0
  %940 = vmatprep.subr.mxu0 0.0
  %941 = vmatpush1.msra.mxu0 0.0
  %942 = vmatprep.subr.mxu0 0.0
  %943 = vmatpush1.msra.mxu0 0.0
  %944 = vmatprep.subr.mxu0 0.0
  %945 = vmatpush1.msra.mxu0 0.0
  %946 = vmatprep.subr.mxu0 0.0
  %947 = vmatpush1.msra.mxu0 0.0
  %948 = vmatprep.subr.mxu0 0.0
  %949 = vmatpush1.msra.mxu0 0.0
  %950 = vmatprep.subr.mxu0 0.0
  %951 = vmatpush1.msra.mxu0 0.0
  %952 = vmatprep.subr.mxu0 0.0
  %953 = vmatpush1.msra.mxu0 0.0
  %954 = vmatprep.subr.mxu0 0.0
  %955 = vmatpush1.msra.mxu0 0.0
  %956 = vmatprep.subr.mxu0 0.0
  %957 = vmatpush1.msra.mxu0 0.0
  %958 = vmatprep.subr.mxu0 0.0
  %959 = vmatpush1.msra.mxu0 0.0
  %960 = vmatprep.subr.mxu0 0.0
  %961 = vmatpush1.msra.mxu0 0.0
  %962 = vmatprep.subr.mxu0 0.0
  %963 = vmatpush1.msra.mxu0 0.0
  %964 = vmatprep.subr.mxu0 0.0
  %965 = vmatpush1.msra.mxu0 0.0
  %966 = vmatprep.subr.mxu0 0.0
  %967 = vmatpush1.msra.mxu0 0.0
  %968 = vmatprep.subr.mxu0 0.0
  %969 = vmatpush1.msra.mxu0 0.0
  %970 = vmatprep.subr.mxu0 0.0
  %971 = vmatpush1.msra.mxu0 0.0
  %972 = vmatprep.subr.mxu0 0.0
  %973 = vmatpush1.msra.mxu0 0.0
  %974 = vmatprep.subr.mxu0 0.0
  %975 = vmatpush1.msra.mxu0 0.0
  %976 = vmatprep.subr.mxu0 0.0
  %977 = vmatpush1.msra.mxu0 0.0
  %978 = vmatprep.subr.mxu0 0.0
  %979 = vmatpush1.msra.mxu0 0.0
  %980 = vmatprep.subr.mxu0 0.0
  %981 = vmatpush1.msra.mxu0 0.0
  %982 = vmatprep.subr.mxu0 0.0
  %983 = vmatpush1.msra.mxu0 0.0
  %984 = vmatprep.subr.mxu0 0.0
  %985 = vmatpush1.msra.mxu0 0.0
  %986 = vmatprep.mubr.f32.mxu0 0.0
  %987 = vmatmul.mubr.f32.gmra.mrb[0].mxu0 %v902
  %v988 = vpop.f32.mrb[0].mxu0
  %v989 = vadd.f32 0.0, %v988
  %v990 = vpop.f32.mrb[0].mxu0
  %991 = vmatprep.mubr.f32.mxu0 0.0
  %992 = vmatmul.mubr.f32.gmra.mrb[0].mxu0 %v905
  %v993 = vpop.f32.mrb[0].mxu0
  %v994 = vadd.f32 0.0, %v993
  %v995 = vpop.f32.mrb[0].mxu0
  %996 = vmatprep.mubr.f32.mxu0 0.0
  %997 = vmatmul.mubr.f32.gmra.mrb[0].mxu0 %v908
  %v998 = vpop.f32.mrb[0].mxu0
  %v999 = vadd.f32 0.0, %v998
  %v1000 = vpop.f32.mrb[0].mxu0
  %1001 = vmatprep.mubr.f32.mxu0 0.0
  %1002 = vmatmul.mubr.f32.gmra.mrb[0].mxu0 %v911
  %v1003 = vpop.f32.mrb[0].mxu0
  %v1004 = vadd.f32 0.0, %v1003
  %v1005 = vpop.f32.mrb[0].mxu0
  %1006 = vmatprep.mubr.f32.mxu0 0.0
  %1007 = vmatmul.mubr.f32.gmra.mrb[0].mxu0 %v914
  %v1008 = vpop.f32.mrb[0].mxu0
  %v1009 = vadd.f32 0.0, %v1008
  %v1010 = vpop.f32.mrb[0].mxu0
  %1011 = vmatprep.mubr.f32.mxu0 0.0
  %1012 = vmatmul.mubr.f32.gmra.mrb[0].mxu0 %v917
  %v1013 = vpop.f32.mrb[0].mxu0
  %v1014 = vadd.f32 0.0, %v1013
  %v1015 = vpop.f32.mrb[0].mxu0
  %1016 = vmatprep.mubr.f32.mxu0 0.0
  %1017 = vmatmul.mubr.f32.gmra.mrb[0].mxu0 %v920
  %v1018 = vpop.f32.mrb[0].mxu0
  %v1019 = vadd.f32 0.0, %v1018
  %v1020 = vpop.f32.mrb[0].mxu0
  %1021 = vdwg.mxu0
  %v1023 = vsel %vm610, %v671, 0
  %v1026 = vsel %vm610, %v672, 0
  %v1029 = vsel %vm610, %v673, 0
  %v1032 = vsel %vm610, %v674, 0
  %v1035 = vsel %vm610, %v675, 0
  %v1038 = vsel %vm610, %v676, 0
  %v1041 = vsel %vm610, %v677, 0
  %1043 = vmatprep.subr.mxu0 0.0
  %1044 = vmatpush1.msra.mxu0 %v449
  %1045 = vmatprep.subr.mxu0 0.0
  %1046 = vmatpush1.msra.mxu0 %v455
  %1047 = vmatprep.subr.mxu0 0.0
  %1048 = vmatpush1.msra.mxu0 %v461
  %1049 = vmatprep.subr.mxu0 0.0
  %1050 = vmatpush1.msra.mxu0 %v467
  %1051 = vmatprep.subr.mxu0 0.0
  %1052 = vmatpush1.msra.mxu0 %v473
  %1053 = vmatprep.subr.mxu0 0.0
  %1054 = vmatpush1.msra.mxu0 %v479
  %1055 = vmatprep.subr.mxu0 0.0
  %1056 = vmatpush1.msra.mxu0 %v485
  %1057 = vmatprep.subr.mxu0 0.0
  %1058 = vmatpush1.msra.mxu0 0.0
  %1059 = vmatprep.subr.mxu0 0.0
  %1060 = vmatpush1.msra.mxu0 0.0
  %1061 = vmatprep.subr.mxu0 0.0
  %1062 = vmatpush1.msra.mxu0 0.0
  %1063 = vmatprep.subr.mxu0 0.0
  %1064 = vmatpush1.msra.mxu0 0.0
  %1065 = vmatprep.subr.mxu0 0.0
  %1066 = vmatpush1.msra.mxu0 0.0
  %1067 = vmatprep.subr.mxu0 0.0
  %1068 = vmatpush1.msra.mxu0 0.0
  %1069 = vmatprep.subr.mxu0 0.0
  %1070 = vmatpush1.msra.mxu0 0.0
  %1071 = vmatprep.subr.mxu0 0.0
  %1072 = vmatpush1.msra.mxu0 0.0
  %1073 = vmatprep.subr.mxu0 0.0
  %1074 = vmatpush1.msra.mxu0 0.0
  %1075 = vmatprep.subr.mxu0 0.0
  %1076 = vmatpush1.msra.mxu0 0.0
  %1077 = vmatprep.subr.mxu0 0.0
  %1078 = vmatpush1.msra.mxu0 0.0
  %1079 = vmatprep.subr.mxu0 0.0
  %1080 = vmatpush1.msra.mxu0 0.0
  %1081 = vmatprep.subr.mxu0 0.0
  %1082 = vmatpush1.msra.mxu0 0.0
  %1083 = vmatprep.subr.mxu0 0.0
  %1084 = vmatpush1.msra.mxu0 0.0
  %1085 = vmatprep.subr.mxu0 0.0
  %1086 = vmatpush1.msra.mxu0 0.0
  %1087 = vmatprep.subr.mxu0 0.0
  %1088 = vmatpush1.msra.mxu0 0.0
  %1089 = vmatprep.subr.mxu0 0.0
  %1090 = vmatpush1.msra.mxu0 0.0
  %1091 = vmatprep.subr.mxu0 0.0
  %1092 = vmatpush1.msra.mxu0 0.0
  %1093 = vmatprep.subr.mxu0 0.0
  %1094 = vmatpush1.msra.mxu0 0.0
  %1095 = vmatprep.subr.mxu0 0.0
  %1096 = vmatpush1.msra.mxu0 0.0
  %1097 = vmatprep.subr.mxu0 0.0
  %1098 = vmatpush1.msra.mxu0 0.0
  %1099 = vmatprep.subr.mxu0 0.0
  %1100 = vmatpush1.msra.mxu0 0.0
  %1101 = vmatprep.subr.mxu0 0.0
  %1102 = vmatpush1.msra.mxu0 0.0
  %1103 = vmatprep.subr.mxu0 0.0
  %1104 = vmatpush1.msra.mxu0 0.0
  %1105 = vmatprep.subr.mxu0 0.0
  %1106 = vmatpush1.msra.mxu0 0.0
  %1107 = vmatprep.mubr.f32.mxu0 0.0
  %1108 = vmatmul.mubr.f32.gmra.mrb[0].mxu0 %v1023
  %v1109 = vpop.f32.mrb[0].mxu0
  %v1110 = vadd.f32 %v989, %v1109
  %v1111 = vpop.f32.mrb[0].mxu0
  %1112 = vmatprep.mubr.f32.mxu0 0.0
  %1113 = vmatmul.mubr.f32.gmra.mrb[0].mxu0 %v1026
  %v1114 = vpop.f32.mrb[0].mxu0
  %v1115 = vadd.f32 %v994, %v1114
  %v1116 = vpop.f32.mrb[0].mxu0
  %1117 = vmatprep.mubr.f32.mxu0 0.0
  %1118 = vmatmul.mubr.f32.gmra.mrb[0].mxu0 %v1029
  %v1119 = vpop.f32.mrb[0].mxu0
  %v1120 = vadd.f32 %v999, %v1119
  %v1121 = vpop.f32.mrb[0].mxu0
  %1122 = vmatprep.mubr.f32.mxu0 0.0
  %1123 = vmatmul.mubr.f32.gmra.mrb[0].mxu0 %v1032
  %v1124 = vpop.f32.mrb[0].mxu0
  %v1125 = vadd.f32 %v1004, %v1124
  %v1126 = vpop.f32.mrb[0].mxu0
  %1127 = vmatprep.mubr.f32.mxu0 0.0
  %1128 = vmatmul.mubr.f32.gmra.mrb[0].mxu0 %v1035
  %v1129 = vpop.f32.mrb[0].mxu0
  %v1130 = vadd.f32 %v1009, %v1129
  %v1131 = vpop.f32.mrb[0].mxu0
  %1132 = vmatprep.mubr.f32.mxu0 0.0
  %1133 = vmatmul.mubr.f32.gmra.mrb[0].mxu0 %v1038
  %v1134 = vpop.f32.mrb[0].mxu0
  %v1135 = vadd.f32 %v1014, %v1134
  %v1136 = vpop.f32.mrb[0].mxu0
  %1137 = vmatprep.mubr.f32.mxu0 0.0
  %1138 = vmatmul.mubr.f32.gmra.mrb[0].mxu0 %v1041
  %v1139 = vpop.f32.mrb[0].mxu0
  %v1140 = vadd.f32 %v1019, %v1139
  %v1141 = vpop.f32.mrb[0].mxu0
  %1142 = vdwg.mxu0
  %v1144 = vsel %vm237, %v328, 0
  %v1147 = vsel %vm237, %v334, 0
  %v1150 = vsel %vm237, %v340, 0
  %v1153 = vsel %vm237, %v346, 0
  %v1156 = vsel %vm237, %v352, 0
  %v1159 = vsel %vm237, %v358, 0
  %v1162 = vsel %vm237, %v364, 0
  %1164 = vmatprep.subr.mxu0 0.0
  %1165 = vmatpush1.xpose.msra.mxu0 %v239
  %1166 = vmatprep.subr.mxu0 0.0
  %1167 = vmatpush1.xpose.msra.mxu0 %v242
  %1168 = vmatprep.subr.mxu0 0.0
  %1169 = vmatpush1.xpose.msra.mxu0 %v245
  %1170 = vmatprep.subr.mxu0 0.0
  %1171 = vmatpush1.xpose.msra.mxu0 %v248
  %1172 = vmatprep.subr.mxu0 0.0
  %1173 = vmatpush1.xpose.msra.mxu0 %v251
  %1174 = vmatprep.subr.mxu0 0.0
  %1175 = vmatpush1.xpose.msra.mxu0 %v254
  %1176 = vmatprep.subr.mxu0 0.0
  %1177 = vmatpush1.xpose.msra.mxu0 %v257
  %1178 = vmatprep.subr.mxu0 0.0
  %1179 = vmatpush1.xpose.msra.mxu0 0.0
  %1180 = vmatprep.subr.mxu0 0.0
  %1181 = vmatpush1.xpose.msra.mxu0 0.0
  %1182 = vmatprep.subr.mxu0 0.0
  %1183 = vmatpush1.xpose.msra.mxu0 0.0
  %1184 = vmatprep.subr.mxu0 0.0
  %1185 = vmatpush1.xpose.msra.mxu0 0.0
  %1186 = vmatprep.subr.mxu0 0.0
  %1187 = vmatpush1.xpose.msra.mxu0 0.0
  %1188 = vmatprep.subr.mxu0 0.0
  %1189 = vmatpush1.xpose.msra.mxu0 0.0
  %1190 = vmatprep.subr.mxu0 0.0
  %1191 = vmatpush1.xpose.msra.mxu0 0.0
  %1192 = vmatprep.subr.mxu0 0.0
  %1193 = vmatpush1.xpose.msra.mxu0 0.0
  %1194 = vmatprep.subr.mxu0 0.0
  %1195 = vmatpush1.xpose.msra.mxu0 0.0
  %1196 = vmatprep.subr.mxu0 0.0
  %1197 = vmatpush1.xpose.msra.mxu0 0.0
  %1198 = vmatprep.subr.mxu0 0.0
  %1199 = vmatpush1.xpose.msra.mxu0 0.0
  %1200 = vmatprep.subr.mxu0 0.0
  %1201 = vmatpush1.xpose.msra.mxu0 0.0
  %1202 = vmatprep.subr.mxu0 0.0
  %1203 = vmatpush1.xpose.msra.mxu0 0.0
  %1204 = vmatprep.subr.mxu0 0.0
  %1205 = vmatpush1.xpose.msra.mxu0 0.0
  %1206 = vmatprep.subr.mxu0 0.0
  %1207 = vmatpush1.xpose.msra.mxu0 0.0
  %1208 = vmatprep.subr.mxu0 0.0
  %1209 = vmatpush1.xpose.msra.mxu0 0.0
  %1210 = vmatprep.subr.mxu0 0.0
  %1211 = vmatpush1.xpose.msra.mxu0 0.0
  %1212 = vmatprep.subr.mxu0 0.0
  %1213 = vmatpush1.xpose.msra.mxu0 0.0
  %1214 = vmatprep.subr.mxu0 0.0
  %1215 = vmatpush1.xpose.msra.mxu0 0.0
  %1216 = vmatprep.subr.mxu0 0.0
  %1217 = vmatpush1.xpose.msra.mxu0 0.0
  %1218 = vmatprep.subr.mxu0 0.0
  %1219 = vmatpush1.xpose.msra.mxu0 0.0
  %1220 = vmatprep.subr.mxu0 0.0
  %1221 = vmatpush1.xpose.msra.mxu0 0.0
  %1222 = vmatprep.subr.mxu0 0.0
  %1223 = vmatpush1.xpose.msra.mxu0 0.0
  %1224 = vmatprep.subr.mxu0 0.0
  %1225 = vmatpush1.xpose.msra.mxu0 0.0
  %1226 = vmatprep.subr.mxu0 0.0
  %1227 = vmatpush1.xpose.msra.mxu0 0.0
  %1228 = vmatprep.mubr.f32.mxu0 0.0
  %1229 = vmatmul.mubr.f32.gmra.mrb[0].mxu0 %v1144
  %v1230 = vpop.f32.mrb[0].mxu0
  %v1231 = vadd.f32 %v214, %v1230
  %v1232 = vpop.f32.mrb[0].mxu0
  %1233 = vmatprep.mubr.f32.mxu0 0.0
  %1234 = vmatmul.mubr.f32.gmra.mrb[0].mxu0 %v1147
  %v1235 = vpop.f32.mrb[0].mxu0
  %v1236 = vadd.f32 %v215, %v1235
  %v1237 = vpop.f32.mrb[0].mxu0
  %1238 = vmatprep.mubr.f32.mxu0 0.0
  %1239 = vmatmul.mubr.f32.gmra.mrb[0].mxu0 %v1150
  %v1240 = vpop.f32.mrb[0].mxu0
  %v1241 = vadd.f32 %v216, %v1240
  %v1242 = vpop.f32.mrb[0].mxu0
  %1243 = vmatprep.mubr.f32.mxu0 0.0
  %1244 = vmatmul.mubr.f32.gmra.mrb[0].mxu0 %v1153
  %v1245 = vpop.f32.mrb[0].mxu0
  %v1246 = vadd.f32 %v217, %v1245
  %v1247 = vpop.f32.mrb[0].mxu0
  %1248 = vmatprep.mubr.f32.mxu0 0.0
  %1249 = vmatmul.mubr.f32.gmra.mrb[0].mxu0 %v1156
  %v1250 = vpop.f32.mrb[0].mxu0
  %v1251 = vadd.f32 %v218, %v1250
  %v1252 = vpop.f32.mrb[0].mxu0
  %1253 = vmatprep.mubr.f32.mxu0 0.0
  %1254 = vmatmul.mubr.f32.gmra.mrb[0].mxu0 %v1159
  %v1255 = vpop.f32.mrb[0].mxu0
  %v1256 = vadd.f32 %v219, %v1255
  %v1257 = vpop.f32.mrb[0].mxu0
  %1258 = vmatprep.mubr.f32.mxu0 0.0
  %1259 = vmatmul.mubr.f32.gmra.mrb[0].mxu0 %v1162
  %v1260 = vpop.f32.mrb[0].mxu0
  %v1261 = vadd.f32 %v220, %v1260
  %v1262 = vpop.f32.mrb[0].mxu0
  %1263 = vdwg.mxu0
  %v1264 = vsel %vm610, %v1231, -inf
  %v1265 = vsel %vm610, %v1236, -inf
  %v1266 = vsel %vm610, %v1241, -inf
  %v1267 = vsel %vm610, %v1246, -inf
  %v1268 = vsel %vm610, %v1251, -inf
  %v1269 = vmax.f32 %v1264, %v1268
  %v1270 = vsel %vm610, %v1256, -inf
  %v1271 = vmax.f32 %v1265, %v1270
  %v1272 = vsel %vm610, %v1261, -inf
  %v1273 = vmax.f32 %v1266, %v1272
  %v1274 = vmax.f32 %v1269, %v1271
  %v1275 = vmax.f32 %v1273, %v1267
  %v1276 = vmax.f32 %v1274, %v1275
  %v1277 = vrot.slane %v1276, 4
  %v1278 = vmax.f32 %v1276, %v1277
  %v1279 = vrot.slane %v1278, 2
  %v1280 = vmax.f32 %v1278, %v1279
  %v1281 = vrot.slane %v1280, 1
  %v1282 = vmax.f32 %v1280, %v1281
  %v1283 = vsub.f32 %v1231, %v1282
  %v1284 = vsub.f32 %v1236, %v1282
  %v1285 = vsub.f32 %v1241, %v1282
  %v1286 = vsub.f32 %v1246, %v1282
  %v1287 = vsub.f32 %v1251, %v1282
  %v1288 = vsub.f32 %v1256, %v1282
  %v1289 = vsub.f32 %v1261, %v1282
  %v1290 = vmul.f32 %v1283, 1.442695
  %v1291 = vpow.pop %v1290
  %v1292 = vmul.f32 %v1284, 1.442695
  %v1293 = vpow.pop %v1292
  %v1294 = vmul.f32 %v1285, 1.442695
  %v1295 = vpow.pop %v1294
  %v1296 = vmul.f32 %v1286, 1.442695
  %v1297 = vpow.pop %v1296
  %v1298 = vmul.f32 %v1287, 1.442695
  %v1299 = vpow.pop %v1298
  %v1300 = vmul.f32 %v1288, 1.442695
  %v1301 = vpow.pop %v1300
  %v1302 = vmul.f32 %v1289, 1.442695
  %v1303 = vpow.pop %v1302
  %v1304 = vsel %vm610, %v1291, 0.0
  %v1305 = vsel %vm610, %v1293, 0.0
  %v1306 = vadd.f32 %v1304, %v1305
  %v1307 = vsel %vm610, %v1295, 0.0
  %v1308 = vadd.f32 %v1306, %v1307
  %v1309 = vsel %vm610, %v1297, 0.0
  %v1310 = vadd.f32 %v1308, %v1309
  %v1311 = vsel %vm610, %v1299, 0.0
  %v1312 = vadd.f32 %v1310, %v1311
  %v1313 = vsel %vm610, %v1301, 0.0
  %v1314 = vadd.f32 %v1312, %v1313
  %v1315 = vsel %vm610, %v1303, 0.0
  %v1316 = vadd.f32 %v1314, %v1315
  %v1317 = vrot.slane %v1316, 4
  %v1318 = vadd.f32 %v1316, %v1317
  %v1319 = vrot.slane %v1318, 2
  %v1320 = vadd.f32 %v1318, %v1319
  %v1321 = vrot.slane %v1320, 1
  %v1322 = vadd.f32 %v1320, %v1321
  %v1323 = vrcp.pop %v1322
  %v1324 = vmul.f32 %v1291, %v1323
  %v1325 = vmul.f32 %v1293, %v1323
  %v1326 = vmul.f32 %v1295, %v1323
  %v1327 = vmul.f32 %v1297, %v1323
  %v1328 = vmul.f32 %v1299, %v1323
  %v1329 = vmul.f32 %v1301, %v1323
  %v1330 = vmul.f32 %v1303, %v1323
  %v1332 = vsel %vm610, %v1324, 0
  %v1335 = vsel %vm610, %v1325, 0
  %v1338 = vsel %vm610, %v1326, 0
  %v1341 = vsel %vm610, %v1327, 0
  %v1344 = vsel %vm610, %v1328, 0
  %v1347 = vsel %vm610, %v1329, 0
  %v1350 = vsel %vm610, %v1330, 0
  %1352 = vmatprep.subr.mxu0 0.0
  %1353 = vmatpush1.msra.mxu0 %v451
  %1354 = vmatprep.subr.mxu0 0.0
  %1355 = vmatpush1.msra.mxu0 %v457
  %1356 = vmatprep.subr.mxu0 0.0
  %1357 = vmatpush1.msra.mxu0 %v463
  %1358 = vmatprep.subr.mxu0 0.0
  %1359 = vmatpush1.msra.mxu0 %v469
  %1360 = vmatprep.subr.mxu0 0.0
  %1361 = vmatpush1.msra.mxu0 %v475
  %1362 = vmatprep.subr.mxu0 0.0
  %1363 = vmatpush1.msra.mxu0 %v481
  %1364 = vmatprep.subr.mxu0 0.0
  %1365 = vmatpush1.msra.mxu0 %v487
  %1366 = vmatprep.subr.mxu0 0.0
  %1367 = vmatpush1.msra.mxu0 0.0
  %1368 = vmatprep.subr.mxu0 0.0
  %1369 = vmatpush1.msra.mxu0 0.0
  %1370 = vmatprep.subr.mxu0 0.0
  %1371 = vmatpush1.msra.mxu0 0.0
  %1372 = vmatprep.subr.mxu0 0.0
  %1373 = vmatpush1.msra.mxu0 0.0
  %1374 = vmatprep.subr.mxu0 0.0
  %1375 = vmatpush1.msra.mxu0 0.0
  %1376 = vmatprep.subr.mxu0 0.0
  %1377 = vmatpush1.msra.mxu0 0.0
  %1378 = vmatprep.subr.mxu0 0.0
  %1379 = vmatpush1.msra.mxu0 0.0
  %1380 = vmatprep.subr.mxu0 0.0
  %1381 = vmatpush1.msra.mxu0 0.0
  %1382 = vmatprep.subr.mxu0 0.0
  %1383 = vmatpush1.msra.mxu0 0.0
  %1384 = vmatprep.subr.mxu0 0.0
  %1385 = vmatpush1.msra.mxu0 0.0
  %1386 = vmatprep.subr.mxu0 0.0
  %1387 = vmatpush1.msra.mxu0 0.0
  %1388 = vmatprep.subr.mxu0 0.0
  %1389 = vmatpush1.msra.mxu0 0.0
  %1390 = vmatprep.subr.mxu0 0.0
  %1391 = vmatpush1.msra.mxu0 0.0
  %1392 = vmatprep.subr.mxu0 0.0
  %1393 = vmatpush1.msra.mxu0 0.0
  %1394 = vmatprep.subr.mxu0 0.0
  %1395 = vmatpush1.msra.mxu0 0.0
  %1396 = vmatprep.subr.mxu0 0.0
  %1397 = vmatpush1.msra.mxu0 0.0
  %1398 = vmatprep.subr.mxu0 0.0
  %1399 = vmatpush1.msra.mxu0 0.0
  %1400 = vmatprep.subr.mxu0 0.0
  %1401 = vmatpush1.msra.mxu0 0.0
  %1402 = vmatprep.subr.mxu0 0.0
  %1403 = vmatpush1.msra.mxu0 0.0
  %1404 = vmatprep.subr.mxu0 0.0
  %1405 = vmatpush1.msra.mxu0 0.0
  %1406 = vmatprep.subr.mxu0 0.0
  %1407 = vmatpush1.msra.mxu0 0.0
  %1408 = vmatprep.subr.mxu0 0.0
  %1409 = vmatpush1.msra.mxu0 0.0
  %1410 = vmatprep.subr.mxu0 0.0
  %1411 = vmatpush1.msra.mxu0 0.0
  %1412 = vmatprep.subr.mxu0 0.0
  %1413 = vmatpush1.msra.mxu0 0.0
  %1414 = vmatprep.subr.mxu0 0.0
  %1415 = vmatpush1.msra.mxu0 0.0
  %1416 = vmatprep.mubr.f32.mxu0 0.0
  %1417 = vmatmul.mubr.f32.gmra.mrb[0].mxu0 %v1332
  %v1418 = vpop.f32.mrb[0].mxu0
  %v1419 = vadd.f32 0.0, %v1418
  %v1420 = vpop.f32.mrb[0].mxu0
  %1421 = vmatprep.mubr.f32.mxu0 0.0
  %1422 = vmatmul.mubr.f32.gmra.mrb[0].mxu0 %v1335
  %v1423 = vpop.f32.mrb[0].mxu0
  %v1424 = vadd.f32 0.0, %v1423
  %v1425 = vpop.f32.mrb[0].mxu0
  %1426 = vmatprep.mubr.f32.mxu0 0.0
  %1427 = vmatmul.mubr.f32.gmra.mrb[0].mxu0 %v1338
  %v1428 = vpop.f32.mrb[0].mxu0
  %v1429 = vadd.f32 0.0, %v1428
  %v1430 = vpop.f32.mrb[0].mxu0
  %1431 = vmatprep.mubr.f32.mxu0 0.0
  %1432 = vmatmul.mubr.f32.gmra.mrb[0].mxu0 %v1341
  %v1433 = vpop.f32.mrb[0].mxu0
  %v1434 = vadd.f32 0.0, %v1433
  %v1435 = vpop.f32.mrb[0].mxu0
  %1436 = vmatprep.mubr.f32.mxu0 0.0
  %1437 = vmatmul.mubr.f32.gmra.mrb[0].mxu0 %v1344
  %v1438 = vpop.f32.mrb[0].mxu0
  %v1439 = vadd.f32 0.0, %v1438
  %v1440 = vpop.f32.mrb[0].mxu0
  %1441 = vmatprep.mubr.f32.mxu0 0.0
  %1442 = vmatmul.mubr.f32.gmra.mrb[0].mxu0 %v1347
  %v1443 = vpop.f32.mrb[0].mxu0
  %v1444 = vadd.f32 0.0, %v1443
  %v1445 = vpop.f32.mrb[0].mxu0
  %1446 = vmatprep.mubr.f32.mxu0 0.0
  %1447 = vmatmul.mubr.f32.gmra.mrb[0].mxu0 %v1350
  %v1448 = vpop.f32.mrb[0].mxu0
  %v1449 = vadd.f32 0.0, %v1448
  %v1450 = vpop.f32.mrb[0].mxu0
  %1451 = vdwg.mxu0
  %v1452 = vadd.f32 %v1110, %v1419
  %v1453 = vadd.f32 %v1115, %v1424
  %v1454 = vadd.f32 %v1120, %v1429
  %v1455 = vadd.f32 %v1125, %v1434
  %v1456 = vadd.f32 %v1130, %v1439
  %v1457 = vadd.f32 %v1135, %v1444
  %v1458 = vadd.f32 %v1140, %v1449
  %1459 = vrot.lane.b32.xlu0 %v328, 64
  %v1460 = vpop.permute.xlu0 %1459
  %1461 = vrot.lane.b32.xlu0 %v334, 64
  %v1462 = vpop.permute.xlu0 %1461
  %1463 = vrot.lane.b32.xlu0 %v340, 64
  %v1464 = vpop.permute.xlu0 %1463
  %1465 = vrot.lane.b32.xlu0 %v346, 64
  %v1466 = vpop.permute.xlu0 %1465
  %1467 = vrot.lane.b32.xlu0 %v352, 64
  %v1468 = vpop.permute.xlu0 %1467
  %1469 = vrot.lane.b32.xlu0 %v358, 64
  %v1470 = vpop.permute.xlu0 %1469
  %1471 = vrot.lane.b32.xlu0 %v364, 64
  %v1472 = vpop.permute.xlu0 %1471
  %v1473 = vsel %vm237, %v1460, 0
  %v1475 = vsel %vm237, %v1462, 0
  %v1477 = vsel %vm237, %v1464, 0
  %v1479 = vsel %vm237, %v1466, 0
  %v1481 = vsel %vm237, %v1468, 0
  %v1483 = vsel %vm237, %v1470, 0
  %v1485 = vsel %vm237, %v1472, 0
  %1487 = vmatprep.subr.mxu0 0.0
  %1488 = vmatpush1.xpose.msra.mxu0 %v239
  %1489 = vmatprep.subr.mxu0 0.0
  %1490 = vmatpush1.xpose.msra.mxu0 %v242
  %1491 = vmatprep.subr.mxu0 0.0
  %1492 = vmatpush1.xpose.msra.mxu0 %v245
  %1493 = vmatprep.subr.mxu0 0.0
  %1494 = vmatpush1.xpose.msra.mxu0 %v248
  %1495 = vmatprep.subr.mxu0 0.0
  %1496 = vmatpush1.xpose.msra.mxu0 %v251
  %1497 = vmatprep.subr.mxu0 0.0
  %1498 = vmatpush1.xpose.msra.mxu0 %v254
  %1499 = vmatprep.subr.mxu0 0.0
  %1500 = vmatpush1.xpose.msra.mxu0 %v257
  %1501 = vmatprep.subr.mxu0 0.0
  %1502 = vmatpush1.xpose.msra.mxu0 0.0
  %1503 = vmatprep.subr.mxu0 0.0
  %1504 = vmatpush1.xpose.msra.mxu0 0.0
  %1505 = vmatprep.subr.mxu0 0.0
  %1506 = vmatpush1.xpose.msra.mxu0 0.0
  %1507 = vmatprep.subr.mxu0 0.0
  %1508 = vmatpush1.xpose.msra.mxu0 0.0
  %1509 = vmatprep.subr.mxu0 0.0
  %1510 = vmatpush1.xpose.msra.mxu0 0.0
  %1511 = vmatprep.subr.mxu0 0.0
  %1512 = vmatpush1.xpose.msra.mxu0 0.0
  %1513 = vmatprep.subr.mxu0 0.0
  %1514 = vmatpush1.xpose.msra.mxu0 0.0
  %1515 = vmatprep.subr.mxu0 0.0
  %1516 = vmatpush1.xpose.msra.mxu0 0.0
  %1517 = vmatprep.subr.mxu0 0.0
  %1518 = vmatpush1.xpose.msra.mxu0 0.0
  %1519 = vmatprep.subr.mxu0 0.0
  %1520 = vmatpush1.xpose.msra.mxu0 0.0
  %1521 = vmatprep.subr.mxu0 0.0
  %1522 = vmatpush1.xpose.msra.mxu0 0.0
  %1523 = vmatprep.subr.mxu0 0.0
  %1524 = vmatpush1.xpose.msra.mxu0 0.0
  %1525 = vmatprep.subr.mxu0 0.0
  %1526 = vmatpush1.xpose.msra.mxu0 0.0
  %1527 = vmatprep.subr.mxu0 0.0
  %1528 = vmatpush1.xpose.msra.mxu0 0.0
  %1529 = vmatprep.subr.mxu0 0.0
  %1530 = vmatpush1.xpose.msra.mxu0 0.0
  %1531 = vmatprep.subr.mxu0 0.0
  %1532 = vmatpush1.xpose.msra.mxu0 0.0
  %1533 = vmatprep.subr.mxu0 0.0
  %1534 = vmatpush1.xpose.msra.mxu0 0.0
  %1535 = vmatprep.subr.mxu0 0.0
  %1536 = vmatpush1.xpose.msra.mxu0 0.0
  %1537 = vmatprep.subr.mxu0 0.0
  %1538 = vmatpush1.xpose.msra.mxu0 0.0
  %1539 = vmatprep.subr.mxu0 0.0
  %1540 = vmatpush1.xpose.msra.mxu0 0.0
  %1541 = vmatprep.subr.mxu0 0.0
  %1542 = vmatpush1.xpose.msra.mxu0 0.0
  %1543 = vmatprep.subr.mxu0 0.0
  %1544 = vmatpush1.xpose.msra.mxu0 0.0
  %1545 = vmatprep.subr.mxu0 0.0
  %1546 = vmatpush1.xpose.msra.mxu0 0.0
  %1547 = vmatprep.subr.mxu0 0.0
  %1548 = vmatpush1.xpose.msra.mxu0 0.0
  %1549 = vmatprep.subr.mxu0 0.0
  %1550 = vmatpush1.xpose.msra.mxu0 0.0
  %1551 = vmatprep.mubr.f32.mxu0 0.0
  %1552 = vmatmul.mubr.f32.gmra.mrb[0].mxu0 %v1473
  %v1553 = vpop.f32.mrb[0].mxu0
  %v1554 = vadd.f32 %v214, %v1553
  %v1555 = vpop.f32.mrb[0].mxu0
  %1556 = vmatprep.mubr.f32.mxu0 0.0
  %1557 = vmatmul.mubr.f32.gmra.mrb[0].mxu0 %v1475
  %v1558 = vpop.f32.mrb[0].mxu0
  %v1559 = vadd.f32 %v215, %v1558
  %v1560 = vpop.f32.mrb[0].mxu0
  %1561 = vmatprep.mubr.f32.mxu0 0.0
  %1562 = vmatmul.mubr.f32.gmra.mrb[0].mxu0 %v1477
  %v1563 = vpop.f32.mrb[0].mxu0
  %v1564 = vadd.f32 %v216, %v1563
  %v1565 = vpop.f32.mrb[0].mxu0
  %1566 = vmatprep.mubr.f32.mxu0 0.0
  %1567 = vmatmul.mubr.f32.gmra.mrb[0].mxu0 %v1479
  %v1568 = vpop.f32.mrb[0].mxu0
  %v1569 = vadd.f32 %v217, %v1568
  %v1570 = vpop.f32.mrb[0].mxu0
  %1571 = vmatprep.mubr.f32.mxu0 0.0
  %1572 = vmatmul.mubr.f32.gmra.mrb[0].mxu0 %v1481
  %v1573 = vpop.f32.mrb[0].mxu0
  %v1574 = vadd.f32 %v218, %v1573
  %v1575 = vpop.f32.mrb[0].mxu0
  %1576 = vmatprep.mubr.f32.mxu0 0.0
  %1577 = vmatmul.mubr.f32.gmra.mrb[0].mxu0 %v1483
  %v1578 = vpop.f32.mrb[0].mxu0
  %v1579 = vadd.f32 %v219, %v1578
  %v1580 = vpop.f32.mrb[0].mxu0
  %1581 = vmatprep.mubr.f32.mxu0 0.0
  %1582 = vmatmul.mubr.f32.gmra.mrb[0].mxu0 %v1485
  %v1583 = vpop.f32.mrb[0].mxu0
  %v1584 = vadd.f32 %v220, %v1583
  %v1585 = vpop.f32.mrb[0].mxu0
  %1586 = vdwg.mxu0
  %v1587 = vsel %vm610, %v1554, -inf
  %v1588 = vsel %vm610, %v1559, -inf
  %v1589 = vsel %vm610, %v1564, -inf
  %v1590 = vsel %vm610, %v1569, -inf
  %v1591 = vsel %vm610, %v1574, -inf
  %v1592 = vmax.f32 %v1587, %v1591
  %v1593 = vsel %vm610, %v1579, -inf
  %v1594 = vmax.f32 %v1588, %v1593
  %v1595 = vsel %vm610, %v1584, -inf
  %v1596 = vmax.f32 %v1589, %v1595
  %v1597 = vmax.f32 %v1592, %v1594
  %v1598 = vmax.f32 %v1596, %v1590
  %v1599 = vmax.f32 %v1597, %v1598
  %v1600 = vrot.slane %v1599, 4
  %v1601 = vmax.f32 %v1599, %v1600
  %v1602 = vrot.slane %v1601, 2
  %v1603 = vmax.f32 %v1601, %v1602
  %v1604 = vrot.slane %v1603, 1
  %v1605 = vmax.f32 %v1603, %v1604
  %v1606 = vsub.f32 %v1554, %v1605
  %v1607 = vsub.f32 %v1559, %v1605
  %v1608 = vsub.f32 %v1564, %v1605
  %v1609 = vsub.f32 %v1569, %v1605
  %v1610 = vsub.f32 %v1574, %v1605
  %v1611 = vsub.f32 %v1579, %v1605
  %v1612 = vsub.f32 %v1584, %v1605
  %v1613 = vmul.f32 %v1606, 1.442695
  %v1614 = vpow.pop %v1613
  %v1615 = vmul.f32 %v1607, 1.442695
  %v1616 = vpow.pop %v1615
  %v1617 = vmul.f32 %v1608, 1.442695
  %v1618 = vpow.pop %v1617
  %v1619 = vmul.f32 %v1609, 1.442695
  %v1620 = vpow.pop %v1619
  %v1621 = vmul.f32 %v1610, 1.442695
  %v1622 = vpow.pop %v1621
  %v1623 = vmul.f32 %v1611, 1.442695
  %v1624 = vpow.pop %v1623
  %v1625 = vmul.f32 %v1612, 1.442695
  %v1626 = vpow.pop %v1625
  %v1627 = vsel %vm610, %v1614, 0.0
  %v1628 = vsel %vm610, %v1616, 0.0
  %v1629 = vadd.f32 %v1627, %v1628
  %v1630 = vsel %vm610, %v1618, 0.0
  %v1631 = vadd.f32 %v1629, %v1630
  %v1632 = vsel %vm610, %v1620, 0.0
  %v1633 = vadd.f32 %v1631, %v1632
  %v1634 = vsel %vm610, %v1622, 0.0
  %v1635 = vadd.f32 %v1633, %v1634
  %v1636 = vsel %vm610, %v1624, 0.0
  %v1637 = vadd.f32 %v1635, %v1636
  %v1638 = vsel %vm610, %v1626, 0.0
  %v1639 = vadd.f32 %v1637, %v1638
  %v1640 = vrot.slane %v1639, 4
  %v1641 = vadd.f32 %v1639, %v1640
  %v1642 = vrot.slane %v1641, 2
  %v1643 = vadd.f32 %v1641, %v1642
  %v1644 = vrot.slane %v1643, 1
  %v1645 = vadd.f32 %v1643, %v1644
  %v1646 = vrcp.pop %v1645
  %v1647 = vmul.f32 %v1614, %v1646
  %v1648 = vmul.f32 %v1616, %v1646
  %v1649 = vmul.f32 %v1618, %v1646
  %v1650 = vmul.f32 %v1620, %v1646
  %v1651 = vmul.f32 %v1622, %v1646
  %v1652 = vmul.f32 %v1624, %v1646
  %v1653 = vmul.f32 %v1626, %v1646
  %1661 = vrot.lane.b32.xlu0 %v451, 64
  %v1662 = vpop.permute.xlu0 %1661
  %1663 = vrot.lane.b32.xlu0 %v457, 64
  %v1664 = vpop.permute.xlu0 %1663
  %1665 = vrot.lane.b32.xlu0 %v463, 64
  %v1666 = vpop.permute.xlu0 %1665
  %1667 = vrot.lane.b32.xlu0 %v469, 64
  %v1668 = vpop.permute.xlu0 %1667
  %1669 = vrot.lane.b32.xlu0 %v475, 64
  %v1670 = vpop.permute.xlu0 %1669
  %1671 = vrot.lane.b32.xlu0 %v481, 64
  %v1672 = vpop.permute.xlu0 %1671
  %1673 = vrot.lane.b32.xlu0 %v487, 64
  %v1674 = vpop.permute.xlu0 %1673
  %v1683 = vsel %vm610, %v1647, 0
  %v1686 = vsel %vm610, %v1648, 0
  %v1689 = vsel %vm610, %v1649, 0
  %v1692 = vsel %vm610, %v1650, 0
  %v1695 = vsel %vm610, %v1651, 0
  %v1698 = vsel %vm610, %v1652, 0
  %v1701 = vsel %vm610, %v1653, 0
  %1703 = vmatprep.subr.mxu0 0.0
  %1704 = vmatpush1.msra.mxu0 %v1662
  %1705 = vmatprep.subr.mxu0 0.0
  %1706 = vmatpush1.msra.mxu0 %v1664
  %1707 = vmatprep.subr.mxu0 0.0
  %1708 = vmatpush1.msra.mxu0 %v1666
  %1709 = vmatprep.subr.mxu0 0.0
  %1710 = vmatpush1.msra.mxu0 %v1668
  %1711 = vmatprep.subr.mxu0 0.0
  %1712 = vmatpush1.msra.mxu0 %v1670
  %1713 = vmatprep.subr.mxu0 0.0
  %1714 = vmatpush1.msra.mxu0 %v1672
  %1715 = vmatprep.subr.mxu0 0.0
  %1716 = vmatpush1.msra.mxu0 %v1674
  %1717 = vmatprep.subr.mxu0 0.0
  %1718 = vmatpush1.msra.mxu0 0.0
  %1719 = vmatprep.subr.mxu0 0.0
  %1720 = vmatpush1.msra.mxu0 0.0
  %1721 = vmatprep.subr.mxu0 0.0
  %1722 = vmatpush1.msra.mxu0 0.0
  %1723 = vmatprep.subr.mxu0 0.0
  %1724 = vmatpush1.msra.mxu0 0.0
  %1725 = vmatprep.subr.mxu0 0.0
  %1726 = vmatpush1.msra.mxu0 0.0
  %1727 = vmatprep.subr.mxu0 0.0
  %1728 = vmatpush1.msra.mxu0 0.0
  %1729 = vmatprep.subr.mxu0 0.0
  %1730 = vmatpush1.msra.mxu0 0.0
  %1731 = vmatprep.subr.mxu0 0.0
  %1732 = vmatpush1.msra.mxu0 0.0
  %1733 = vmatprep.subr.mxu0 0.0
  %1734 = vmatpush1.msra.mxu0 0.0
  %1735 = vmatprep.subr.mxu0 0.0
  %1736 = vmatpush1.msra.mxu0 0.0
  %1737 = vmatprep.subr.mxu0 0.0
  %1738 = vmatpush1.msra.mxu0 0.0
  %1739 = vmatprep.subr.mxu0 0.0
  %1740 = vmatpush1.msra.mxu0 0.0
  %1741 = vmatprep.subr.mxu0 0.0
  %1742 = vmatpush1.msra.mxu0 0.0
  %1743 = vmatprep.subr.mxu0 0.0
  %1744 = vmatpush1.msra.mxu0 0.0
  %1745 = vmatprep.subr.mxu0 0.0
  %1746 = vmatpush1.msra.mxu0 0.0
  %1747 = vmatprep.subr.mxu0 0.0
  %1748 = vmatpush1.msra.mxu0 0.0
  %1749 = vmatprep.subr.mxu0 0.0
  %1750 = vmatpush1.msra.mxu0 0.0
  %1751 = vmatprep.subr.mxu0 0.0
  %1752 = vmatpush1.msra.mxu0 0.0
  %1753 = vmatprep.subr.mxu0 0.0
  %1754 = vmatpush1.msra.mxu0 0.0
  %1755 = vmatprep.subr.mxu0 0.0
  %1756 = vmatpush1.msra.mxu0 0.0
  %1757 = vmatprep.subr.mxu0 0.0
  %1758 = vmatpush1.msra.mxu0 0.0
  %1759 = vmatprep.subr.mxu0 0.0
  %1760 = vmatpush1.msra.mxu0 0.0
  %1761 = vmatprep.subr.mxu0 0.0
  %1762 = vmatpush1.msra.mxu0 0.0
  %1763 = vmatprep.subr.mxu0 0.0
  %1764 = vmatpush1.msra.mxu0 0.0
  %1765 = vmatprep.subr.mxu0 0.0
  %1766 = vmatpush1.msra.mxu0 0.0
  %1767 = vmatprep.mubr.f32.mxu0 0.0
  %1768 = vmatmul.mubr.f32.gmra.mrb[0].mxu0 %v1683
  %v1769 = vpop.f32.mrb[0].mxu0
  %v1770 = vadd.f32 0.0, %v1769
  %v1771 = vpop.f32.mrb[0].mxu0
  %1772 = vmatprep.mubr.f32.mxu0 0.0
  %1773 = vmatmul.mubr.f32.gmra.mrb[0].mxu0 %v1686
  %v1774 = vpop.f32.mrb[0].mxu0
  %v1775 = vadd.f32 0.0, %v1774
  %v1776 = vpop.f32.mrb[0].mxu0
  %1777 = vmatprep.mubr.f32.mxu0 0.0
  %1778 = vmatmul.mubr.f32.gmra.mrb[0].mxu0 %v1689
  %v1779 = vpop.f32.mrb[0].mxu0
  %v1780 = vadd.f32 0.0, %v1779
  %v1781 = vpop.f32.mrb[0].mxu0
  %1782 = vmatprep.mubr.f32.mxu0 0.0
  %1783 = vmatmul.mubr.f32.gmra.mrb[0].mxu0 %v1692
  %v1784 = vpop.f32.mrb[0].mxu0
  %v1785 = vadd.f32 0.0, %v1784
  %v1786 = vpop.f32.mrb[0].mxu0
  %1787 = vmatprep.mubr.f32.mxu0 0.0
  %1788 = vmatmul.mubr.f32.gmra.mrb[0].mxu0 %v1695
  %v1789 = vpop.f32.mrb[0].mxu0
  %v1790 = vadd.f32 0.0, %v1789
  %v1791 = vpop.f32.mrb[0].mxu0
  %1792 = vmatprep.mubr.f32.mxu0 0.0
  %1793 = vmatmul.mubr.f32.gmra.mrb[0].mxu0 %v1698
  %v1794 = vpop.f32.mrb[0].mxu0
  %v1795 = vadd.f32 0.0, %v1794
  %v1796 = vpop.f32.mrb[0].mxu0
  %1797 = vmatprep.mubr.f32.mxu0 0.0
  %1798 = vmatmul.mubr.f32.gmra.mrb[0].mxu0 %v1701
  %v1799 = vpop.f32.mrb[0].mxu0
  %v1800 = vadd.f32 0.0, %v1799
  %v1801 = vpop.f32.mrb[0].mxu0
  %1802 = vdwg.mxu0
  %v1803 = vadd.f32 %v1452, %v1770
  %v1804 = vadd.f32 %v1453, %v1775
  %v1805 = vadd.f32 %v1454, %v1780
  %v1806 = vadd.f32 %v1455, %v1785
  %v1807 = vadd.f32 %v1456, %v1790
  %v1808 = vadd.f32 %v1457, %v1795
  %v1809 = vadd.f32 %v1458, %v1800
  %v1810 = vlaneseq
  %v1811 = vshrl.u32 %v1810, 7
  %v1812 = vsub.s32 0, %v1811
  %v1813 = vrot.slane %v29, %v1812
  %v1814 = vadd.f32 %v1803, %v1813
  %v1815 = vadd.f32 %v1804, %v1813
  %v1816 = vadd.f32 %v1805, %v1813
  %v1817 = vadd.f32 %v1806, %v1813
  %v1818 = vadd.f32 %v1807, %v1813
  %v1819 = vadd.f32 %v1808, %v1813
  %v1820 = vadd.f32 %v1809, %v1813
  %v1821 = vsel %vm237, %v1814, 0.0
  %1822 = vadd.xlane.f32.xlu0 %v1821
  %v1823 = vpop.xlane.xlu0 %1822
  %v1824 = vsel %vm237, %v1815, 0.0
  %1825 = vadd.xlane.f32.xlu0 %v1824
  %v1826 = vpop.xlane.xlu0 %1825
  %v1827 = vsel %vm237, %v1816, 0.0
  %1828 = vadd.xlane.f32.xlu0 %v1827
  %v1829 = vpop.xlane.xlu0 %1828
  %v1830 = vsel %vm237, %v1817, 0.0
  %1831 = vadd.xlane.f32.xlu0 %v1830
  %v1832 = vpop.xlane.xlu0 %1831
  %v1833 = vsel %vm237, %v1818, 0.0
  %1834 = vadd.xlane.f32.xlu0 %v1833
  %v1835 = vpop.xlane.xlu0 %1834
  %v1836 = vsel %vm237, %v1819, 0.0
  %1837 = vadd.xlane.f32.xlu0 %v1836
  %v1838 = vpop.xlane.xlu0 %1837
  %v1839 = vsel %vm237, %v1820, 0.0
  %1840 = vadd.xlane.f32.xlu0 %v1839
  %v1841 = vpop.xlane.xlu0 %1840
  %v1842 = vrcp.pop 64.0
  %v1843 = vmul.f32 %v1823, %v1842
  %v1844 = vmul.f32 %v1826, %v1842
  %v1845 = vmul.f32 %v1829, %v1842
  %v1846 = vmul.f32 %v1832, %v1842
  %v1847 = vmul.f32 %v1835, %v1842
  %v1848 = vmul.f32 %v1838, %v1842
  %v1849 = vmul.f32 %v1841, %v1842
  %v1850 = vsub.f32 %v1814, %v1843
  %v1851 = vsub.f32 %v1815, %v1844
  %v1852 = vsub.f32 %v1816, %v1845
  %v1853 = vsub.f32 %v1817, %v1846
  %v1854 = vsub.f32 %v1818, %v1847
  %v1855 = vsub.f32 %v1819, %v1848
  %v1856 = vsub.f32 %v1820, %v1849
  %v1857 = vmul.f32 %v1850, %v1850
  %v1858 = vmul.f32 %v1851, %v1851
  %v1859 = vmul.f32 %v1852, %v1852
  %v1860 = vmul.f32 %v1853, %v1853
  %v1861 = vmul.f32 %v1854, %v1854
  %v1862 = vmul.f32 %v1855, %v1855
  %v1863 = vmul.f32 %v1856, %v1856
  %v1864 = vsel %vm237, %v1857, 0.0
  %1865 = vadd.xlane.f32.xlu0 %v1864
  %v1866 = vpop.xlane.xlu0 %1865
  %v1867 = vsel %vm237, %v1858, 0.0
  %1868 = vadd.xlane.f32.xlu0 %v1867
  %v1869 = vpop.xlane.xlu0 %1868
  %v1870 = vsel %vm237, %v1859, 0.0
  %1871 = vadd.xlane.f32.xlu0 %v1870
  %v1872 = vpop.xlane.xlu0 %1871
  %v1873 = vsel %vm237, %v1860, 0.0
  %1874 = vadd.xlane.f32.xlu0 %v1873
  %v1875 = vpop.xlane.xlu0 %1874
  %v1876 = vsel %vm237, %v1861, 0.0
  %1877 = vadd.xlane.f32.xlu0 %v1876
  %v1878 = vpop.xlane.xlu0 %1877
  %v1879 = vsel %vm237, %v1862, 0.0
  %1880 = vadd.xlane.f32.xlu0 %v1879
  %v1881 = vpop.xlane.xlu0 %1880
  %v1882 = vsel %vm237, %v1863, 0.0
  %1883 = vadd.xlane.f32.xlu0 %v1882
  %v1884 = vpop.xlane.xlu0 %1883
  %v1885 = vmul.f32 %v1866, %v1842
  %v1886 = vmul.f32 %v1869, %v1842
  %v1887 = vmul.f32 %v1872, %v1842
  %v1888 = vmul.f32 %v1875, %v1842
  %v1889 = vmul.f32 %v1878, %v1842
  %v1890 = vmul.f32 %v1881, %v1842
  %v1891 = vmul.f32 %v1884, %v1842
  %v1892 = vadd.f32 %v1885, 1e-05
  %v1893 = vadd.f32 %v1886, 1e-05
  %v1894 = vadd.f32 %v1887, 1e-05
  %v1895 = vadd.f32 %v1888, 1e-05
  %v1896 = vadd.f32 %v1889, 1e-05
  %v1897 = vadd.f32 %v1890, 1e-05
  %v1898 = vadd.f32 %v1891, 1e-05
  %v1899 = vrsqrt.pop %v1892
  %v1900 = vrsqrt.pop %v1893
  %v1901 = vrsqrt.pop %v1894
  %v1902 = vrsqrt.pop %v1895
  %v1903 = vrsqrt.pop %v1896
  %v1904 = vrsqrt.pop %v1897
  %v1905 = vrsqrt.pop %v1898
  %v1906 = vmul.f32 %v1850, %v1899
  %v1907 = vmul.f32 %v1851, %v1900
  %v1908 = vmul.f32 %v1852, %v1901
  %v1909 = vmul.f32 %v1853, %v1902
  %v1910 = vmul.f32 %v1854, %v1903
  %v1911 = vmul.f32 %v1855, %v1904
  %v1912 = vmul.f32 %v1856, %v1905
  %v1913 = vlaneseq
  %v1914 = vshrl.u32 %v1913, 7
  %v1915 = vsub.s32 1, %v1914
  %v1916 = vrot.slane %v29, %v1915
  %v1917 = vmul.f32 %v1906, %v1916
  %v1918 = vmul.f32 %v1907, %v1916
  %v1919 = vmul.f32 %v1908, %v1916
  %v1920 = vmul.f32 %v1909, %v1916
  %v1921 = vmul.f32 %v1910, %v1916
  %v1922 = vmul.f32 %v1911, %v1916
  %v1923 = vmul.f32 %v1912, %v1916
  %v1924 = vlaneseq
  %v1925 = vshrl.u32 %v1924, 7
  %v1926 = vsub.s32 2, %v1925
  %v1927 = vrot.slane %v29, %v1926
  %v1928 = vadd.f32 %v1917, %v1927
  %v1929 = vadd.f32 %v1918, %v1927
  %v1930 = vadd.f32 %v1919, %v1927
  %v1931 = vadd.f32 %v1920, %v1927
  %v1932 = vadd.f32 %v1921, %v1927
  %v1933 = vadd.f32 %v1922, %v1927
  %v1934 = vadd.f32 %v1923, %v1927
  %v1935 = vld [vmem:[%s4] sm:$0xff]
  %v1936 = vld [vmem:[%s4 + $0x8] sm:$0xff]
  %v1937 = vld [vmem:[%s4 + $0x10] sm:$0xff]
  %v1938 = vld [vmem:[%s4 + $0x18] sm:$0xff]
  %v1939 = vld [vmem:[%s4 + $0x20] sm:$0xff]
  %v1940 = vld [vmem:[%s4 + $0x28] sm:$0xff]
  %v1941 = vld [vmem:[%s4 + $0x30] sm:$0xff]
  %v1942 = vld [vmem:[%s4 + $0x38] sm:$0xff]
  %v1943 = vlaneseq
  %v1944 = vshrl.u32 %v1943, 7
  %v1945 = vsub.s32 5, %v1944
  %v1946 = vrot.slane %v29, %v1945
  %v1948 = vsel %vm237, %v1928, 0
  %v1951 = vsel %vm237, %v1929, 0
  %v1954 = vsel %vm237, %v1930, 0
  %v1957 = vsel %vm237, %v1931, 0
  %v1960 = vsel %vm237, %v1932, 0
  %v1963 = vsel %vm237, %v1933, 0
  %v1966 = vsel %vm237, %v1934, 0
  %1968 = vmatprep.subr.mxu0 0.0
  %1969 = vmatpush1.msra.mxu0 %v1935
  %1970 = vmatprep.subr.mxu0 0.0
  %1971 = vmatpush1.msra.mxu0 %v1936
  %1972 = vmatprep.subr.mxu0 0.0
  %1973 = vmatpush1.msra.mxu0 %v1937
  %1974 = vmatprep.subr.mxu0 0.0
  %1975 = vmatpush1.msra.mxu0 %v1938
  %1976 = vmatprep.subr.mxu0 0.0
  %1977 = vmatpush1.msra.mxu0 %v1939
  %1978 = vmatprep.subr.mxu0 0.0
  %1979 = vmatpush1.msra.mxu0 %v1940
  %1980 = vmatprep.subr.mxu0 0.0
  %1981 = vmatpush1.msra.mxu0 %v1941
  %1982 = vmatprep.subr.mxu0 0.0
  %1983 = vmatpush1.msra.mxu0 %v1942
  %1984 = vmatprep.subr.mxu0 0.0
  %1985 = vmatpush1.msra.mxu0 0.0
  %1986 = vmatprep.subr.mxu0 0.0
  %1987 = vmatpush1.msra.mxu0 0.0
  %1988 = vmatprep.subr.mxu0 0.0
  %1989 = vmatpush1.msra.mxu0 0.0
  %1990 = vmatprep.subr.mxu0 0.0
  %1991 = vmatpush1.msra.mxu0 0.0
  %1992 = vmatprep.subr.mxu0 0.0
  %1993 = vmatpush1.msra.mxu0 0.0
  %1994 = vmatprep.subr.mxu0 0.0
  %1995 = vmatpush1.msra.mxu0 0.0
  %1996 = vmatprep.subr.mxu0 0.0
  %1997 = vmatpush1.msra.mxu0 0.0
  %1998 = vmatprep.subr.mxu0 0.0
  %1999 = vmatpush1.msra.mxu0 0.0
  %2000 = vmatprep.subr.mxu0 0.0
  %2001 = vmatpush1.msra.mxu0 0.0
  %2002 = vmatprep.subr.mxu0 0.0
  %2003 = vmatpush1.msra.mxu0 0.0
  %2004 = vmatprep.subr.mxu0 0.0
  %2005 = vmatpush1.msra.mxu0 0.0
  %2006 = vmatprep.subr.mxu0 0.0
  %2007 = vmatpush1.msra.mxu0 0.0
  %2008 = vmatprep.subr.mxu0 0.0
  %2009 = vmatpush1.msra.mxu0 0.0
  %2010 = vmatprep.subr.mxu0 0.0
  %2011 = vmatpush1.msra.mxu0 0.0
  %2012 = vmatprep.subr.mxu0 0.0
  %2013 = vmatpush1.msra.mxu0 0.0
  %2014 = vmatprep.subr.mxu0 0.0
  %2015 = vmatpush1.msra.mxu0 0.0
  %2016 = vmatprep.subr.mxu0 0.0
  %2017 = vmatpush1.msra.mxu0 0.0
  %2018 = vmatprep.subr.mxu0 0.0
  %2019 = vmatpush1.msra.mxu0 0.0
  %2020 = vmatprep.subr.mxu0 0.0
  %2021 = vmatpush1.msra.mxu0 0.0
  %2022 = vmatprep.subr.mxu0 0.0
  %2023 = vmatpush1.msra.mxu0 0.0
  %2024 = vmatprep.subr.mxu0 0.0
  %2025 = vmatpush1.msra.mxu0 0.0
  %2026 = vmatprep.subr.mxu0 0.0
  %2027 = vmatpush1.msra.mxu0 0.0
  %2028 = vmatprep.subr.mxu0 0.0
  %2029 = vmatpush1.msra.mxu0 0.0
  %2030 = vmatprep.subr.mxu0 0.0
  %2031 = vmatpush1.msra.mxu0 0.0
  %2032 = vmatprep.mubr.f32.mxu0 0.0
  %2033 = vmatmul.mubr.f32.gmra.mrb[0].mxu0 %v1948
  %v2034 = vpop.f32.mrb[0].mxu0
  %v2035 = vadd.f32 %v1946, %v2034
  %v2036 = vpop.f32.mrb[0].mxu0
  %2037 = vmatprep.mubr.f32.mxu0 0.0
  %2038 = vmatmul.mubr.f32.gmra.mrb[0].mxu0 %v1951
  %v2039 = vpop.f32.mrb[0].mxu0
  %v2040 = vadd.f32 %v1946, %v2039
  %v2041 = vpop.f32.mrb[0].mxu0
  %2042 = vmatprep.mubr.f32.mxu0 0.0
  %2043 = vmatmul.mubr.f32.gmra.mrb[0].mxu0 %v1954
  %v2044 = vpop.f32.mrb[0].mxu0
  %v2045 = vadd.f32 %v1946, %v2044
  %v2046 = vpop.f32.mrb[0].mxu0
  %2047 = vmatprep.mubr.f32.mxu0 0.0
  %2048 = vmatmul.mubr.f32.gmra.mrb[0].mxu0 %v1957
  %v2049 = vpop.f32.mrb[0].mxu0
  %v2050 = vadd.f32 %v1946, %v2049
  %v2051 = vpop.f32.mrb[0].mxu0
  %2052 = vmatprep.mubr.f32.mxu0 0.0
  %2053 = vmatmul.mubr.f32.gmra.mrb[0].mxu0 %v1960
  %v2054 = vpop.f32.mrb[0].mxu0
  %v2055 = vadd.f32 %v1946, %v2054
  %v2056 = vpop.f32.mrb[0].mxu0
  %2057 = vmatprep.mubr.f32.mxu0 0.0
  %2058 = vmatmul.mubr.f32.gmra.mrb[0].mxu0 %v1963
  %v2059 = vpop.f32.mrb[0].mxu0
  %v2060 = vadd.f32 %v1946, %v2059
  %v2061 = vpop.f32.mrb[0].mxu0
  %2062 = vmatprep.mubr.f32.mxu0 0.0
  %2063 = vmatmul.mubr.f32.gmra.mrb[0].mxu0 %v1966
  %v2064 = vpop.f32.mrb[0].mxu0
  %v2065 = vadd.f32 %v1946, %v2064
  %v2066 = vpop.f32.mrb[0].mxu0
  %2067 = vdwg.mxu0
  %v2068 = vmax.f32 %v2035, 0.0
  %v2069 = vmax.f32 %v2040, 0.0
  %v2070 = vmax.f32 %v2045, 0.0
  %v2071 = vmax.f32 %v2050, 0.0
  %v2072 = vmax.f32 %v2055, 0.0
  %v2073 = vmax.f32 %v2060, 0.0
  %v2074 = vmax.f32 %v2065, 0.0
  %v2075 = vld [vmem:[%s5] sm:$0xff]
  %v2076 = vld [vmem:[%s5 + $0x8] sm:$0xff]
  %v2077 = vld [vmem:[%s5 + $0x10] sm:$0xff]
  %v2078 = vld [vmem:[%s5 + $0x18] sm:$0xff]
  %v2079 = vld [vmem:[%s5 + $0x20] sm:$0xff]
  %v2080 = vld [vmem:[%s5 + $0x28] sm:$0xff]
  %v2081 = vld [vmem:[%s5 + $0x30] sm:$0xff]
  %v2082 = vld [vmem:[%s5 + $0x38] sm:$0xff]
  %v2083 = vld [vmem:[%s5 + $0x40] sm:$0xff]
  %v2084 = vld [vmem:[%s5 + $0x48] sm:$0xff]
  %v2085 = vld [vmem:[%s5 + $0x50] sm:$0xff]
  %v2086 = vld [vmem:[%s5 + $0x58] sm:$0xff]
  %v2087 = vld [vmem:[%s5 + $0x60] sm:$0xff]
  %v2088 = vld [vmem:[%s5 + $0x68] sm:$0xff]
  %v2089 = vld [vmem:[%s5 + $0x70] sm:$0xff]
  %v2090 = vld [vmem:[%s5 + $0x78] sm:$0xff]
  %v2091 = vlaneseq
  %v2092 = vshrl.u32 %v2091, 7
  %v2093 = vsub.s32 6, %v2092
  %v2094 = vrot.slane %v29, %v2093
  %2095 = vmatprep.subr.mxu0 0.0
  %2096 = vmatpush1.msra.mxu0 %v2075
  %2097 = vmatprep.subr.mxu0 0.0
  %2098 = vmatpush1.msra.mxu0 %v2076
  %2099 = vmatprep.subr.mxu0 0.0
  %2100 = vmatpush1.msra.mxu0 %v2077
  %2101 = vmatprep.subr.mxu0 0.0
  %2102 = vmatpush1.msra.mxu0 %v2078
  %2103 = vmatprep.subr.mxu0 0.0
  %2104 = vmatpush1.msra.mxu0 %v2079
  %2105 = vmatprep.subr.mxu0 0.0
  %2106 = vmatpush1.msra.mxu0 %v2080
  %2107 = vmatprep.subr.mxu0 0.0
  %2108 = vmatpush1.msra.mxu0 %v2081
  %2109 = vmatprep.subr.mxu0 0.0
  %2110 = vmatpush1.msra.mxu0 %v2082
  %2111 = vmatprep.subr.mxu0 0.0
  %2112 = vmatpush1.msra.mxu0 %v2083
  %2113 = vmatprep.subr.mxu0 0.0
  %2114 = vmatpush1.msra.mxu0 %v2084
  %2115 = vmatprep.subr.mxu0 0.0
  %2116 = vmatpush1.msra.mxu0 %v2085
  %2117 = vmatprep.subr.mxu0 0.0
  %2118 = vmatpush1.msra.mxu0 %v2086
  %2119 = vmatprep.subr.mxu0 0.0
  %2120 = vmatpush1.msra.mxu0 %v2087
  %2121 = vmatprep.subr.mxu0 0.0
  %2122 = vmatpush1.msra.mxu0 %v2088
  %2123 = vmatprep.subr.mxu0 0.0
  %2124 = vmatpush1.msra.mxu0 %v2089
  %2125 = vmatprep.subr.mxu0 0.0
  %2126 = vmatpush1.msra.mxu0 %v2090
  %2127 = vmatprep.subr.mxu0 0.0
  %2128 = vmatpush1.msra.mxu0 0.0
  %2129 = vmatprep.subr.mxu0 0.0
  %2130 = vmatpush1.msra.mxu0 0.0
  %2131 = vmatprep.subr.mxu0 0.0
  %2132 = vmatpush1.msra.mxu0 0.0
  %2133 = vmatprep.subr.mxu0 0.0
  %2134 = vmatpush1.msra.mxu0 0.0
  %2135 = vmatprep.subr.mxu0 0.0
  %2136 = vmatpush1.msra.mxu0 0.0
  %2137 = vmatprep.subr.mxu0 0.0
  %2138 = vmatpush1.msra.mxu0 0.0
  %2139 = vmatprep.subr.mxu0 0.0
  %2140 = vmatpush1.msra.mxu0 0.0
  %2141 = vmatprep.subr.mxu0 0.0
  %2142 = vmatpush1.msra.mxu0 0.0
  %2143 = vmatprep.subr.mxu0 0.0
  %2144 = vmatpush1.msra.mxu0 0.0
  %2145 = vmatprep.subr.mxu0 0.0
  %2146 = vmatpush1.msra.mxu0 0.0
  %2147 = vmatprep.subr.mxu0 0.0
  %2148 = vmatpush1.msra.mxu0 0.0
  %2149 = vmatprep.subr.mxu0 0.0
  %2150 = vmatpush1.msra.mxu0 0.0
  %2151 = vmatprep.subr.mxu0 0.0
  %2152 = vmatpush1.msra.mxu0 0.0
  %2153 = vmatprep.subr.mxu0 0.0
  %2154 = vmatpush1.msra.mxu0 0.0
  %2155 = vmatprep.subr.mxu0 0.0
  %2156 = vmatpush1.msra.mxu0 0.0
  %2157 = vmatprep.subr.mxu0 0.0
  %2158 = vmatpush1.msra.mxu0 0.0
  %2159 = vmatprep.mubr.f32.mxu0 0.0
  %2160 = vmatmul.mubr.f32.gmra.mrb[0].mxu0 %v2068
  %v2161 = vpop.f32.mrb[0].mxu0
  %v2162 = vadd.f32 %v2094, %v2161
  %v2163 = vpop.f32.mrb[0].mxu0
  %2164 = vmatprep.mubr.f32.mxu0 0.0
  %2165 = vmatmul.mubr.f32.gmra.mrb[0].mxu0 %v2069
  %v2166 = vpop.f32.mrb[0].mxu0
  %v2167 = vadd.f32 %v2094, %v2166
  %v2168 = vpop.f32.mrb[0].mxu0
  %2169 = vmatprep.mubr.f32.mxu0 0.0
  %2170 = vmatmul.mubr.f32.gmra.mrb[0].mxu0 %v2070
  %v2171 = vpop.f32.mrb[0].mxu0
  %v2172 = vadd.f32 %v2094, %v2171
  %v2173 = vpop.f32.mrb[0].mxu0
  %2174 = vmatprep.mubr.f32.mxu0 0.0
  %2175 = vmatmul.mubr.f32.gmra.mrb[0].mxu0 %v2071
  %v2176 = vpop.f32.mrb[0].mxu0
  %v2177 = vadd.f32 %v2094, %v2176
  %v2178 = vpop.f32.mrb[0].mxu0
  %2179 = vmatprep.mubr.f32.mxu0 0.0
  %2180 = vmatmul.mubr.f32.gmra.mrb[0].mxu0 %v2072
  %v2181 = vpop.f32.mrb[0].mxu0
  %v2182 = vadd.f32 %v2094, %v2181
  %v2183 = vpop.f32.mrb[0].mxu0
  %2184 = vmatprep.mubr.f32.mxu0 0.0
  %2185 = vmatmul.mubr.f32.gmra.mrb[0].mxu0 %v2073
  %v2186 = vpop.f32.mrb[0].mxu0
  %v2187 = vadd.f32 %v2094, %v2186
  %v2188 = vpop.f32.mrb[0].mxu0
  %2189 = vmatprep.mubr.f32.mxu0 0.0
  %2190 = vmatmul.mubr.f32.gmra.mrb[0].mxu0 %v2074
  %v2191 = vpop.f32.mrb[0].mxu0
  %v2192 = vadd.f32 %v2094, %v2191
  %v2193 = vpop.f32.mrb[0].mxu0
  %2194 = vdwg.mxu0
  %v2195 = vmax.f32 %v2162, 0.0
  %v2196 = vmax.f32 %v2167, 0.0
  %v2197 = vmax.f32 %v2172, 0.0
  %v2198 = vmax.f32 %v2177, 0.0
  %v2199 = vmax.f32 %v2182, 0.0
  %v2200 = vmax.f32 %v2187, 0.0
  %v2201 = vmax.f32 %v2192, 0.0
  %v2202 = vadd.f32 %v1928, %v2195
  %v2203 = vadd.f32 %v1929, %v2196
  %v2204 = vadd.f32 %v1930, %v2197
  %v2205 = vadd.f32 %v1931, %v2198
  %v2206 = vadd.f32 %v1932, %v2199
  %v2207 = vadd.f32 %v1933, %v2200
  %v2208 = vadd.f32 %v1934, %v2201
  %v2209 = vsel %vm237, %v2202, 0.0
  %2210 = vadd.xlane.f32.xlu0 %v2209
  %v2211 = vpop.xlane.xlu0 %2210
  %v2212 = vsel %vm237, %v2203, 0.0
  %2213 = vadd.xlane.f32.xlu0 %v2212
  %v2214 = vpop.xlane.xlu0 %2213
  %v2215 = vsel %vm237, %v2204, 0.0
  %2216 = vadd.xlane.f32.xlu0 %v2215
  %v2217 = vpop.xlane.xlu0 %2216
  %v2218 = vsel %vm237, %v2205, 0.0
  %2219 = vadd.xlane.f32.xlu0 %v2218
  %v2220 = vpop.xlane.xlu0 %2219
  %v2221 = vsel %vm237, %v2206, 0.0
  %2222 = vadd.xlane.f32.xlu0 %v2221
  %v2223 = vpop.xlane.xlu0 %2222
  %v2224 = vsel %vm237, %v2207, 0.0
  %2225 = vadd.xlane.f32.xlu0 %v2224
  %v2226 = vpop.xlane.xlu0 %2225
  %v2227 = vsel %vm237, %v2208, 0.0
  %2228 = vadd.xlane.f32.xlu0 %v2227
  %v2229 = vpop.xlane.xlu0 %2228
  %v2230 = vmul.f32 %v2211, %v1842
  %v2231 = vmul.f32 %v2214, %v1842
  %v2232 = vmul.f32 %v2217, %v1842
  %v2233 = vmul.f32 %v2220, %v1842
  %v2234 = vmul.f32 %v2223, %v1842
  %v2235 = vmul.f32 %v2226, %v1842
  %v2236 = vmul.f32 %v2229, %v1842
  %v2237 = vsub.f32 %v2202, %v2230
  %v2238 = vsub.f32 %v2203, %v2231
  %v2239 = vsub.f32 %v2204, %v2232
  %v2240 = vsub.f32 %v2205, %v2233
  %v2241 = vsub.f32 %v2206, %v2234
  %v2242 = vsub.f32 %v2207, %v2235
  %v2243 = vsub.f32 %v2208, %v2236
  %v2244 = vmul.f32 %v2237, %v2237
  %v2245 = vmul.f32 %v2238, %v2238
  %v2246 = vmul.f32 %v2239, %v2239
  %v2247 = vmul.f32 %v2240, %v2240
  %v2248 = vmul.f32 %v2241, %v2241
  %v2249 = vmul.f32 %v2242, %v2242
  %v2250 = vmul.f32 %v2243, %v2243
  %v2251 = vsel %vm237, %v2244, 0.0
  %2252 = vadd.xlane.f32.xlu0 %v2251
  %v2253 = vpop.xlane.xlu0 %2252
  %v2254 = vsel %vm237, %v2245, 0.0
  %2255 = vadd.xlane.f32.xlu0 %v2254
  %v2256 = vpop.xlane.xlu0 %2255
  %v2257 = vsel %vm237, %v2246, 0.0
  %2258 = vadd.xlane.f32.xlu0 %v2257
  %v2259 = vpop.xlane.xlu0 %2258
  %v2260 = vsel %vm237, %v2247, 0.0
  %2261 = vadd.xlane.f32.xlu0 %v2260
  %v2262 = vpop.xlane.xlu0 %2261
  %v2263 = vsel %vm237, %v2248, 0.0
  %2264 = vadd.xlane.f32.xlu0 %v2263
  %v2265 = vpop.xlane.xlu0 %2264
  %v2266 = vsel %vm237, %v2249, 0.0
  %2267 = vadd.xlane.f32.xlu0 %v2266
  %v2268 = vpop.xlane.xlu0 %2267
  %v2269 = vsel %vm237, %v2250, 0.0
  %2270 = vadd.xlane.f32.xlu0 %v2269
  %v2271 = vpop.xlane.xlu0 %2270
  %v2272 = vmul.f32 %v2253, %v1842
  %v2273 = vmul.f32 %v2256, %v1842
  %v2274 = vmul.f32 %v2259, %v1842
  %v2275 = vmul.f32 %v2262, %v1842
  %v2276 = vmul.f32 %v2265, %v1842
  %v2277 = vmul.f32 %v2268, %v1842
  %v2278 = vmul.f32 %v2271, %v1842
  %v2279 = vadd.f32 %v2272, 1e-05
  %v2280 = vadd.f32 %v2273, 1e-05
  %v2281 = vadd.f32 %v2274, 1e-05
  %v2282 = vadd.f32 %v2275, 1e-05
  %v2283 = vadd.f32 %v2276, 1e-05
  %v2284 = vadd.f32 %v2277, 1e-05
  %v2285 = vadd.f32 %v2278, 1e-05
  %v2286 = vrsqrt.pop %v2279
  %v2287 = vrsqrt.pop %v2280
  %v2288 = vrsqrt.pop %v2281
  %v2289 = vrsqrt.pop %v2282
  %v2290 = vrsqrt.pop %v2283
  %v2291 = vrsqrt.pop %v2284
  %v2292 = vrsqrt.pop %v2285
  %v2293 = vmul.f32 %v2237, %v2286
  %v2294 = vmul.f32 %v2238, %v2287
  %v2295 = vmul.f32 %v2239, %v2288
  %v2296 = vmul.f32 %v2240, %v2289
  %v2297 = vmul.f32 %v2241, %v2290
  %v2298 = vmul.f32 %v2242, %v2291
  %v2299 = vmul.f32 %v2243, %v2292
  %v2300 = vlaneseq
  %v2301 = vshrl.u32 %v2300, 7
  %v2302 = vsub.s32 3, %v2301
  %v2303 = vrot.slane %v29, %v2302
  %v2304 = vmul.f32 %v2293, %v2303
  %v2305 = vmul.f32 %v2294, %v2303
  %v2306 = vmul.f32 %v2295, %v2303
  %v2307 = vmul.f32 %v2296, %v2303
  %v2308 = vmul.f32 %v2297, %v2303
  %v2309 = vmul.f32 %v2298, %v2303
  %v2310 = vmul.f32 %v2299, %v2303
  %v2311 = vlaneseq
  %v2312 = vshrl.u32 %v2311, 7
  %v2313 = vsub.s32 4, %v2312
  %v2314 = vrot.slane %v29, %v2313
  %v2315 = vadd.f32 %v2304, %v2314
  %v2316 = vadd.f32 %v2305, %v2314
  %v2317 = vadd.f32 %v2306, %v2314
  %v2318 = vadd.f32 %v2307, %v2314
  %v2319 = vadd.f32 %v2308, %v2314
  %v2320 = vadd.f32 %v2309, %v2314
  %v2321 = vadd.f32 %v2310, %v2314
  %vm2322 = vcmp.eq.f32.partialorder %v173, %v206
  %v2323 = vsel %vm2322, 1, 0
  %v2324 = vcvt.s32.f32 %v2323
  %v2326 = vsel %vm610, %v2324, 0
  %2328 = vmatprep.subr.mxu0 0.0
  %2329 = vmatpush1.msra.mxu0 %v2315
  %2330 = vmatprep.subr.mxu0 0.0
  %2331 = vmatpush1.msra.mxu0 %v2316
  %2332 = vmatprep.subr.mxu0 0.0
  %2333 = vmatpush1.msra.mxu0 %v2317
  %2334 = vmatprep.subr.mxu0 0.0
  %2335 = vmatpush1.msra.mxu0 %v2318
  %2336 = vmatprep.subr.mxu0 0.0
  %2337 = vmatpush1.msra.mxu0 %v2319
  %2338 = vmatprep.subr.mxu0 0.0
  %2339 = vmatpush1.msra.mxu0 %v2320
  %2340 = vmatprep.subr.mxu0 0.0
  %2341 = vmatpush1.msra.mxu0 %v2321
  %2342 = vmatprep.subr.mxu0 0.0
  %2343 = vmatpush1.msra.mxu0 0.0
  %2344 = vmatprep.subr.mxu0 0.0
  %2345 = vmatpush1.msra.mxu0 0.0
  %2346 = vmatprep.subr.mxu0 0.0
  %2347 = vmatpush1.msra.mxu0 0.0
  %2348 = vmatprep.subr.mxu0 0.0
  %2349 = vmatpush1.msra.mxu0 0.0
  %2350 = vmatprep.subr.mxu0 0.0
  %2351 = vmatpush1.msra.mxu0 0.0
  %2352 = vmatprep.subr.mxu0 0.0
  %2353 = vmatpush1.msra.mxu0 0.0
  %2354 = vmatprep.subr.mxu0 0.0
  %2355 = vmatpush1.msra.mxu0 0.0
  %2356 = vmatprep.subr.mxu0 0.0
  %2357 = vmatpush1.msra.mxu0 0.0
  %2358 = vmatprep.subr.mxu0 0.0
  %2359 = vmatpush1.msra.mxu0 0.0
  %2360 = vmatprep.subr.mxu0 0.0
  %2361 = vmatpush1.msra.mxu0 0.0
  %2362 = vmatprep.subr.mxu0 0.0
  %2363 = vmatpush1.msra.mxu0 0.0
  %2364 = vmatprep.subr.mxu0 0.0
  %2365 = vmatpush1.msra.mxu0 0.0
  %2366 = vmatprep.subr.mxu0 0.0
  %2367 = vmatpush1.msra.mxu0 0.0
  %2368 = vmatprep.subr.mxu0 0.0
  %2369 = vmatpush1.msra.mxu0 0.0
  %2370 = vmatprep.subr.mxu0 0.0
  %2371 = vmatpush1.msra.mxu0 0.0
  %2372 = vmatprep.subr.mxu0 0.0
  %2373 = vmatpush1.msra.mxu0 0.0
  %2374 = vmatprep.subr.mxu0 0.0
  %2375 = vmatpush1.msra.mxu0 0.0
  %2376 = vmatprep.subr.mxu0 0.0
  %2377 = vmatpush1.msra.mxu0 0.0
  %2378 = vmatprep.subr.mxu0 0.0
  %2379 = vmatpush1.msra.mxu0 0.0
  %2380 = vmatprep.subr.mxu0 0.0
  %2381 = vmatpush1.msra.mxu0 0.0
  %2382 = vmatprep.subr.mxu0 0.0
  %2383 = vmatpush1.msra.mxu0 0.0
  %2384 = vmatprep.subr.mxu0 0.0
  %2385 = vmatpush1.msra.mxu0 0.0
  %2386 = vmatprep.subr.mxu0 0.0
  %2387 = vmatpush1.msra.mxu0 0.0
  %2388 = vmatprep.subr.mxu0 0.0
  %2389 = vmatpush1.msra.mxu0 0.0
  %2390 = vmatprep.subr.mxu0 0.0
  %2391 = vmatpush1.msra.mxu0 0.0
  %2392 = vmatprep.mubr.f32.mxu0 0.0
  %2393 = vmatmul.mubr.f32.gmra.mrb[0].mxu0 %v2326
  %v2394 = vpop.f32.mrb[0].mxu0
  %v2395 = vadd.f32 0.0, %v2394
  %v2396 = vpop.f32.mrb[0].mxu0
  %2397 = vdwg.mxu0
  %v2398 = vld [vmem:[%s6] sm:$0xff]
  %v2399 = vld [vmem:[%s6 + $0x8] sm:$0xff]
  %v2400 = vld [vmem:[%s6 + $0x10] sm:$0xff]
  %v2401 = vld [vmem:[%s6 + $0x18] sm:$0xff]
  %v2402 = vld [vmem:[%s6 + $0x20] sm:$0xff]
  %v2403 = vld [vmem:[%s6 + $0x28] sm:$0xff]
  %v2404 = vld [vmem:[%s6 + $0x30] sm:$0xff]
  %v2405 = vld [vmem:[%s6 + $0x38] sm:$0xff]
  %v2406 = vlaneseq
  %v2407 = vshrl.u32 %v2406, 7
  %v2408 = vsub.s32 7, %v2407
  %v2409 = vrot.slane %v29, %v2408
  %v2411 = vsel %vm237, %v2395, 0
  %2413 = vmatprep.subr.mxu0 0.0
  %2414 = vmatpush1.msra.mxu0 %v2398
  %2415 = vmatprep.subr.mxu0 0.0
  %2416 = vmatpush1.msra.mxu0 %v2399
  %2417 = vmatprep.subr.mxu0 0.0
  %2418 = vmatpush1.msra.mxu0 %v2400
  %2419 = vmatprep.subr.mxu0 0.0
  %2420 = vmatpush1.msra.mxu0 %v2401
  %2421 = vmatprep.subr.mxu0 0.0
  %2422 = vmatpush1.msra.mxu0 %v2402
  %2423 = vmatprep.subr.mxu0 0.0
  %2424 = vmatpush1.msra.mxu0 %v2403
  %2425 = vmatprep.subr.mxu0 0.0
  %2426 = vmatpush1.msra.mxu0 %v2404
  %2427 = vmatprep.subr.mxu0 0.0
  %2428 = vmatpush1.msra.mxu0 %v2405
  %2429 = vmatprep.subr.mxu0 0.0
  %2430 = vmatpush1.msra.mxu0 0.0
  %2431 = vmatprep.subr.mxu0 0.0
  %2432 = vmatpush1.msra.mxu0 0.0
  %2433 = vmatprep.subr.mxu0 0.0
  %2434 = vmatpush1.msra.mxu0 0.0
  %2435 = vmatprep.subr.mxu0 0.0
  %2436 = vmatpush1.msra.mxu0 0.0
  %2437 = vmatprep.subr.mxu0 0.0
  %2438 = vmatpush1.msra.mxu0 0.0
  %2439 = vmatprep.subr.mxu0 0.0
  %2440 = vmatpush1.msra.mxu0 0.0
  %2441 = vmatprep.subr.mxu0 0.0
  %2442 = vmatpush1.msra.mxu0 0.0
  %2443 = vmatprep.subr.mxu0 0.0
  %2444 = vmatpush1.msra.mxu0 0.0
  %2445 = vmatprep.subr.mxu0 0.0
  %2446 = vmatpush1.msra.mxu0 0.0
  %2447 = vmatprep.subr.mxu0 0.0
  %2448 = vmatpush1.msra.mxu0 0.0
  %2449 = vmatprep.subr.mxu0 0.0
  %2450 = vmatpush1.msra.mxu0 0.0
  %2451 = vmatprep.subr.mxu0 0.0
  %2452 = vmatpush1.msra.mxu0 0.0
  %2453 = vmatprep.subr.mxu0 0.0
  %2454 = vmatpush1.msra.mxu0 0.0
  %2455 = vmatprep.subr.mxu0 0.0
  %2456 = vmatpush1.msra.mxu0 0.0
  %2457 = vmatprep.subr.mxu0 0.0
  %2458 = vmatpush1.msra.mxu0 0.0
  %2459 = vmatprep.subr.mxu0 0.0
  %2460 = vmatpush1.msra.mxu0 0.0
  %2461 = vmatprep.subr.mxu0 0.0
  %2462 = vmatpush1.msra.mxu0 0.0
  %2463 = vmatprep.subr.mxu0 0.0
  %2464 = vmatpush1.msra.mxu0 0.0
  %2465 = vmatprep.subr.mxu0 0.0
  %2466 = vmatpush1.msra.mxu0 0.0
  %2467 = vmatprep.subr.mxu0 0.0
  %2468 = vmatpush1.msra.mxu0 0.0
  %2469 = vmatprep.subr.mxu0 0.0
  %2470 = vmatpush1.msra.mxu0 0.0
  %2471 = vmatprep.subr.mxu0 0.0
  %2472 = vmatpush1.msra.mxu0 0.0
  %2473 = vmatprep.subr.mxu0 0.0
  %2474 = vmatpush1.msra.mxu0 0.0
  %2475 = vmatprep.subr.mxu0 0.0
  %2476 = vmatpush1.msra.mxu0 0.0
  %2477 = vmatprep.mubr.f32.mxu0 0.0
  %2478 = vmatmul.mubr.f32.gmra.mrb[0].mxu0 %v2411
  %v2479 = vpop.f32.mrb[0].mxu0
  %v2480 = vadd.f32 %v2409, %v2479
  %v2481 = vpop.f32.mrb[0].mxu0
  %2482 = vdwg.mxu0
  %2483 = vst [vmem:[%s8] sm:$0xff] %v2480
  // Predicated region
  $region34: #{net_forward.1} parent=0 // pred_check
    _
  $region35: #{net_forward.1} parent=0 // pred_check_branch
    %2485 = sbr.rel (0) target = $region37
  $region36: #{net_forward.1} parent=0 // pred_region
    _
  $region37: #{net_forward.1} parent=0 // pred_fallthru
    _
  // Predicated region
  $region38: #{net_forward.1} parent=0 // pred_check
    _
  $region39: #{net_forward.1} parent=0 // pred_check_branch
    %2487 = sbr.rel (0) target = $region41
  $region40: #{net_forward.1} parent=0 // pred_region
    _
  $region41: #{net_forward.1} parent=0 // pred_fallthru
    _

</llo_original>
